<compile_context>
chip_gen: v7x
topology: tpu7x:2x2x1
jax: 0.10.0
libtpu: 0.0.40
codegen_flags: <defaults>
</compile_context>

<pallas_src>
import jax
import jax.numpy as jnp
from jax import lax
from jax.experimental import pallas as pl
from jax.experimental.pallas import tpu as pltpu


def _round_up(n, m):
    return ((n + m - 1) // m) * m


def _num_tensorcores_per_chip():
    """Best-effort detection of multi-TensorCore chips (v7x-style / megacore)."""
    try:
        kind = jax.devices()[0].device_kind.lower()
    except Exception:  # pragma: no cover - defensive
        return 1
    return 2 if any(tag in kind for tag in ("v7", "v4", "v5p")) else 1


def _choose_tb(bp, n_tc):
    """Pick the batch tile. bp is already a multiple of 8."""
    if n_tc >= 2 and bp >= 256:
        # Keep >= 2 grid steps so ("parallel",) shards the batch across both
        # TensorCores; per-step tile a multiple of 128 keeps (2, TB) stores
        # lane-dense.
        return min(512, _round_up((bp + 1) // 2, 128))
    if bp <= 1024:
        return bp            # single grid step on 1-TC chips (v5e / v6e)
    return 1024              # multi-step fallback; multiple of 128


def _weight_spec(shape):
    """Constant-index (VMEM-resident) spec; single-buffered if supported."""
    idx = lambda i, _n=len(shape): (0,) * _n
    try:
        return pl.BlockSpec(shape, idx, pipeline_mode=pl.Buffered(1))
    except TypeError:  # older jax without pipeline_mode kwarg
        return pl.BlockSpec(shape, idx)


def qnet_kernel(x_ref, w1_ref, b1_ref, w2_ref, b2_ref, w3t_ref, b3_ref, o_ref):
    # x:   (TB, 4)   f32          w1:  (4, 128)   f32     b1: (1, 128) f32
    # w2:  (128,128) bf16         b2:  (1, 128)   f32
    # w3t: (2, 128)  bf16         b3:  (2, 1)     f32
    # o:   (2, TB)   f32  (transposed Q-values)
    x = x_ref[...]
    w1 = w1_ref[...]

    # fc1: K=4 contraction as 4 VPU broadcast multiply-adds (skip the MXU).
    h1 = b1_ref[...] + x[:, 0:1] * w1[0:1, :]
    for k in range(1, 4):                      # static unroll
        h1 = h1 + x[:, k:k + 1] * w1[k:k + 1, :]
    h1 = jnp.maximum(h1, 0.0)

    # fc2: bf16 x bf16 on the MXU, f32 accumulation; bias add / ReLU in f32.
    h2 = jnp.dot(h1.astype(jnp.bfloat16), w2_ref[...],
                 preferred_element_type=jnp.float32) + b2_ref[...]
    h2 = jnp.maximum(h2, 0.0)

    # fc3 transposed: (2,128) . (TB,128)^T  ->  (2, TB); tiny lane-dense store.
    out_t = lax.dot_general(
        w3t_ref[...], h2.astype(jnp.bfloat16),
        dimension_numbers=(((1,), (1,)), ((), ())),
        preferred_element_type=jnp.float32) + b3_ref[...]
    o_ref[...] = out_t.astype(o_ref.dtype)


def qnet_forward(x, params):
    """x: (B, 4) f32 (or (4,)). Returns (B, 2) f32 Q-values (or (2,))."""
    squeeze = x.ndim == 1
    if squeeze:
        x = x[None, :]
    B = x.shape[0]

    w1, b1 = params["w1"], params["b1"]
    w2, b2 = params["w2"], params["b2"]
    w3t, b3 = params["w3t"], params["b3"]

    n_tc = _num_tensorcores_per_chip()
    Bp = _round_up(B, 8)
    TB = _choose_tb(Bp, n_tc)
    Bp = _round_up(Bp, TB)
    if Bp != B:                                 # skip pad when not needed
        x = jnp.pad(x, ((0, Bp - B), (0, 0)))

    grid = (Bp // TB,)

    out_t = pl.pallas_call(
        qnet_kernel,
        out_shape=jax.ShapeDtypeStruct((2, Bp), jnp.float32),
        grid=grid,
        in_specs=[
            pl.BlockSpec((TB, 4), lambda i: (i, 0)),   # x tile (double-buffered)
            _weight_spec((4, 128)),                    # w1
            _weight_spec((1, 128)),                    # b1
            _weight_spec((128, 128)),                  # w2 (bf16)
            _weight_spec((1, 128)),                    # b2
            _weight_spec((2, 128)),                    # w3 transposed (bf16)
            _weight_spec((2, 1)),                      # b3 (column)
        ],
        out_specs=pl.BlockSpec((2, TB), lambda i: (0, i)),
        compiler_params=pltpu.CompilerParams(
            dimension_semantics=("parallel",)),        # shards batch on 2-TC chips
    )(x, w1, b1, w2, b2, w3t, b3)

    out = out_t[:, :B].T                               # (B, 2), tiny slice+transpose
    return out[0] if squeeze else out


def init_params(key):
    """PyTorch nn.Linear default init: U(-1/sqrt(fan_in), +1/sqrt(fan_in)).
    Weights stored (in, out); w2 bf16; w3 stored transposed (2,128) bf16."""
    def linear(key, fan_in, fan_out):
        kw, kb = jax.random.split(key)
        bound = 1.0 / (fan_in ** 0.5)
        w = jax.random.uniform(kw, (fan_in, fan_out), jnp.float32, -bound, bound)
        b = jax.random.uniform(kb, (fan_out,), jnp.float32, -bound, bound)
        return w, b

    key, k1, k2, k3 = jax.random.split(key, 4)
    w1, b1 = linear(k1, 4, 128)
    w2, b2 = linear(k2, 128, 128)
    w3, b3 = linear(k3, 128, 2)
    return {
        "w1": w1, "b1": b1.reshape(1, 128),
        "w2": w2.astype(jnp.bfloat16), "b2": b2.reshape(1, 128),
        "w3t": w3.T.astype(jnp.bfloat16),   # (2, 128)
        "b3": b3.reshape(2, 1),             # (2, 1)
    }


def qnet_reference(x, params):
    """Pure-JAX reference with identical parameter precision (bf16 w2/w3)."""
    h1 = jnp.maximum(
        jnp.dot(x, params["w1"], precision=lax.Precision.HIGHEST)
        + params["b1"], 0.0)
    h2 = jnp.maximum(
        jnp.dot(h1.astype(jnp.bfloat16), params["w2"],
                preferred_element_type=jnp.float32) + params["b2"], 0.0)
    out = jnp.dot(h2.astype(jnp.bfloat16), params["w3t"].T,
                  preferred_element_type=jnp.float32) + params["b3"].T
    return out


# TODO(synk): sample_action's host-side epsilon-greedy (random.random / .item())
# stays outside the kernel; the kernel only implements forward().


if __name__ == "__main__":
    key = jax.random.PRNGKey(0)
    key, kx = jax.random.split(key)
    params = init_params(key)

    # Replay-minibatch-style forward (B=512): single grid step on v5e/v6e,
    # two 256-row steps on 2-TC chips.
    batch = 512
    x = jax.random.normal(kx, (batch, 4), jnp.float32)
    out = jax.block_until_ready(qnet_forward(x, params))
    ref = qnet_reference(x, params)
    assert out.shape == (batch, 2), out.shape
    assert jnp.allclose(out, ref, atol=1e-2, rtol=1e-2), (
        float(jnp.max(jnp.abs(out - ref))))

    # Tiny act()-style batch (B=5): exercises row padding / small-tile path.
    x_small = jax.random.normal(jax.random.fold_in(kx, 1), (5, 4), jnp.float32)
    out_small = jax.block_until_ready(qnet_forward(x_small, params))
    ref_small = qnet_reference(x_small, params)
    assert out_small.shape == (5, 2), out_small.shape
    assert jnp.allclose(out_small, ref_small, atol=1e-2, rtol=1e-2), (
        float(jnp.max(jnp.abs(out_small - ref_small))))

    # Single observation (act() path with a 1-D obs).
    obs = jax.random.normal(jax.random.fold_in(kx, 2), (4,), jnp.float32)
    q = jax.block_until_ready(qnet_forward(obs, params))
    assert q.shape == (2,), q.shape
    assert jnp.allclose(q, qnet_reference(obs[None, :], params)[0],
                        atol=1e-2, rtol=1e-2)

    print("KERNEL_OK")
</pallas_src>

<mosaic_0001>
module attributes {stable_mosaic.version = 11 : i64} {
  func.func @qnet_kernel(%arg0: i32, %arg1: memref<512x4xf32, #tpu.memory_space<vmem>>, %arg2: memref<4x128xf32, #tpu.memory_space<vmem>>, %arg3: memref<1x128xf32, #tpu.memory_space<vmem>>, %arg4: memref<128x128xbf16, #tpu.memory_space<vmem>>, %arg5: memref<1x128xf32, #tpu.memory_space<vmem>>, %arg6: memref<2x128xbf16, #tpu.memory_space<vmem>>, %arg7: memref<2x1xf32, #tpu.memory_space<vmem>>, %arg8: memref<2x512xf32, #tpu.memory_space<vmem>>) attributes {dimension_semantics = [#tpu.dimension_semantics<parallel>], iteration_bounds = array<i64: 1>, scalar_prefetch = 0 : i64, scratch_operands = 0 : i64, tpu.core_type = #tpu.core_type<tc>, window_params = [{transform_indices = @transform_0, window_bounds = array<i64: 512, 4>}, {pipeline_mode = #tpu.pipeline_mode<synchronous>, transform_indices = @transform_1, window_bounds = array<i64: 4, 128>}, {pipeline_mode = #tpu.pipeline_mode<synchronous>, transform_indices = @transform_2, window_bounds = array<i64: 1, 128>}, {pipeline_mode = #tpu.pipeline_mode<synchronous>, transform_indices = @transform_3, window_bounds = array<i64: 128, 128>}, {pipeline_mode = #tpu.pipeline_mode<synchronous>, transform_indices = @transform_4, window_bounds = array<i64: 1, 128>}, {pipeline_mode = #tpu.pipeline_mode<synchronous>, transform_indices = @transform_5, window_bounds = array<i64: 2, 128>}, {pipeline_mode = #tpu.pipeline_mode<synchronous>, transform_indices = @transform_6, window_bounds = array<i64: 2, 1>}, {transform_indices = @transform_7, window_bounds = array<i64: 2, 512>}]} {
    %c0 = arith.constant 0 : index
    %c0_0 = arith.constant 0 : index
    %0 = vector.load %arg1[%c0, %c0_0] : memref<512x4xf32, #tpu.memory_space<vmem>>, vector<512x4xf32>
    %c0_1 = arith.constant 0 : index
    %c0_2 = arith.constant 0 : index
    %1 = vector.load %arg2[%c0_1, %c0_2] : memref<4x128xf32, #tpu.memory_space<vmem>>, vector<4x128xf32>
    %c0_3 = arith.constant 0 : index
    %c0_4 = arith.constant 0 : index
    %2 = vector.load %arg3[%c0_3, %c0_4] : memref<1x128xf32, #tpu.memory_space<vmem>>, vector<1x128xf32>
    %3 = vector.extract_strided_slice %0 {offsets = [0, 0], sizes = [512, 1], strides = [1, 1]} : vector<512x4xf32> to vector<512x1xf32>
    %4 = vector.extract_strided_slice %1 {offsets = [0, 0], sizes = [1, 128], strides = [1, 1]} : vector<4x128xf32> to vector<1x128xf32>
    %5 = vector.broadcast %3 : vector<512x1xf32> to vector<512x128xf32>
    %6 = vector.broadcast %4 : vector<1x128xf32> to vector<512x128xf32>
    %7 = arith.mulf %5, %6 : vector<512x128xf32>
    %8 = vector.broadcast %2 : vector<1x128xf32> to vector<512x128xf32>
    %9 = arith.addf %8, %7 : vector<512x128xf32>
    %10 = vector.extract_strided_slice %0 {offsets = [0, 1], sizes = [512, 1], strides = [1, 1]} : vector<512x4xf32> to vector<512x1xf32>
    %11 = vector.extract_strided_slice %1 {offsets = [1, 0], sizes = [1, 128], strides = [1, 1]} : vector<4x128xf32> to vector<1x128xf32>
    %12 = vector.broadcast %10 : vector<512x1xf32> to vector<512x128xf32>
    %13 = vector.broadcast %11 : vector<1x128xf32> to vector<512x128xf32>
    %14 = arith.mulf %12, %13 : vector<512x128xf32>
    %15 = arith.addf %9, %14 : vector<512x128xf32>
    %16 = vector.extract_strided_slice %0 {offsets = [0, 2], sizes = [512, 1], strides = [1, 1]} : vector<512x4xf32> to vector<512x1xf32>
    %17 = vector.extract_strided_slice %1 {offsets = [2, 0], sizes = [1, 128], strides = [1, 1]} : vector<4x128xf32> to vector<1x128xf32>
    %18 = vector.broadcast %16 : vector<512x1xf32> to vector<512x128xf32>
    %19 = vector.broadcast %17 : vector<1x128xf32> to vector<512x128xf32>
    %20 = arith.mulf %18, %19 : vector<512x128xf32>
    %21 = arith.addf %15, %20 : vector<512x128xf32>
    %22 = vector.extract_strided_slice %0 {offsets = [0, 3], sizes = [512, 1], strides = [1, 1]} : vector<512x4xf32> to vector<512x1xf32>
    %23 = vector.extract_strided_slice %1 {offsets = [3, 0], sizes = [1, 128], strides = [1, 1]} : vector<4x128xf32> to vector<1x128xf32>
    %24 = vector.broadcast %22 : vector<512x1xf32> to vector<512x128xf32>
    %25 = vector.broadcast %23 : vector<1x128xf32> to vector<512x128xf32>
    %26 = arith.mulf %24, %25 : vector<512x128xf32>
    %27 = arith.addf %21, %26 : vector<512x128xf32>
    %cst = arith.constant 0.000000e+00 : f32
    %28 = vector.broadcast %cst : f32 to vector<512x128xf32>
    %29 = arith.maximumf %27, %28 : vector<512x128xf32>
    %30 = arith.truncf %29 : vector<512x128xf32> to vector<512x128xbf16>
    %c0_5 = arith.constant 0 : index
    %c0_6 = arith.constant 0 : index
    %31 = vector.load %arg4[%c0_5, %c0_6] : memref<128x128xbf16, #tpu.memory_space<vmem>>, vector<128x128xbf16>
    %cst_7 = arith.constant dense<0.000000e+00> : vector<512x128xf32>
    %32 = tpu.matmul %30, %31, %cst_7 {dimension_numbers = #tpu.dot_dimension_numbers<[1], [0], [0], [1], [0, 0, 1, 1], [], []>} : vector<512x128xbf16>, vector<128x128xbf16>, vector<512x128xf32> -> vector<512x128xf32>
    %c0_8 = arith.constant 0 : index
    %c0_9 = arith.constant 0 : index
    %33 = vector.load %arg5[%c0_8, %c0_9] : memref<1x128xf32, #tpu.memory_space<vmem>>, vector<1x128xf32>
    %34 = vector.broadcast %33 : vector<1x128xf32> to vector<512x128xf32>
    %35 = arith.addf %32, %34 : vector<512x128xf32>
    %cst_10 = arith.constant 0.000000e+00 : f32
    %36 = vector.broadcast %cst_10 : f32 to vector<512x128xf32>
    %37 = arith.maximumf %35, %36 : vector<512x128xf32>
    %c0_11 = arith.constant 0 : index
    %c0_12 = arith.constant 0 : index
    %38 = vector.load %arg6[%c0_11, %c0_12] : memref<2x128xbf16, #tpu.memory_space<vmem>>, vector<2x128xbf16>
    %39 = arith.truncf %37 : vector<512x128xf32> to vector<512x128xbf16>
    %cst_13 = arith.constant dense<0.000000e+00> : vector<2x512xf32>
    %40 = tpu.matmul %38, %39, %cst_13 {dimension_numbers = #tpu.dot_dimension_numbers<[1], [1], [0], [0], [0, 0, 1, 0], [], []>} : vector<2x128xbf16>, vector<512x128xbf16>, vector<2x512xf32> -> vector<2x512xf32>
    %c0_14 = arith.constant 0 : index
    %c0_15 = arith.constant 0 : index
    %41 = vector.load %arg7[%c0_14, %c0_15] : memref<2x1xf32, #tpu.memory_space<vmem>>, vector<2x1xf32>
    %42 = vector.broadcast %41 : vector<2x1xf32> to vector<2x512xf32>
    %43 = arith.addf %40, %42 : vector<2x512xf32>
    %c0_16 = arith.constant 0 : index
    %c0_17 = arith.constant 0 : index
    %44 = vector.load %arg8[%c0_16, %c0_17] : memref<2x512xf32, #tpu.memory_space<vmem>>, vector<2x512xf32>
    tpu.vector_store %arg8[%c0_16, %c0_17], %43 {strides = array<i32>} : memref<2x512xf32, #tpu.memory_space<vmem>>, vector<2x512xf32>,
    return
  }
  func.func @transform_0(%arg0: i32) -> (i32, i32) {
    %c0_i32 = arith.constant 0 : i32
    %c0_i32_0 = arith.constant 0 : i32
    return %arg0, %c0_i32 : i32, i32
  }
  func.func @transform_1(%arg0: i32) -> (i32, i32) {
    %c0_i32 = arith.constant 0 : i32
    %c0_i32_0 = arith.constant 0 : i32
    %c0_i32_1 = arith.constant 0 : i32
    return %c0_i32, %c0_i32_0 : i32, i32
  }
  func.func @transform_2(%arg0: i32) -> (i32, i32) {
    %c0_i32 = arith.constant 0 : i32
    %c0_i32_0 = arith.constant 0 : i32
    %c0_i32_1 = arith.constant 0 : i32
    return %c0_i32, %c0_i32_0 : i32, i32
  }
  func.func @transform_3(%arg0: i32) -> (i32, i32) {
    %c0_i32 = arith.constant 0 : i32
    %c0_i32_0 = arith.constant 0 : i32
    %c0_i32_1 = arith.constant 0 : i32
    return %c0_i32, %c0_i32_0 : i32, i32
  }
  func.func @transform_4(%arg0: i32) -> (i32, i32) {
    %c0_i32 = arith.constant 0 : i32
    %c0_i32_0 = arith.constant 0 : i32
    %c0_i32_1 = arith.constant 0 : i32
    return %c0_i32, %c0_i32_0 : i32, i32
  }
  func.func @transform_5(%arg0: i32) -> (i32, i32) {
    %c0_i32 = arith.constant 0 : i32
    %c0_i32_0 = arith.constant 0 : i32
    %c0_i32_1 = arith.constant 0 : i32
    return %c0_i32, %c0_i32_0 : i32, i32
  }
  func.func @transform_6(%arg0: i32) -> (i32, i32) {
    %c0_i32 = arith.constant 0 : i32
    %c0_i32_0 = arith.constant 0 : i32
    %c0_i32_1 = arith.constant 0 : i32
    return %c0_i32, %c0_i32_0 : i32, i32
  }
  func.func @transform_7(%arg0: i32) -> (i32, i32) {
    %c0_i32 = arith.constant 0 : i32
    %c0_i32_0 = arith.constant 0 : i32
    return %c0_i32, %arg0 : i32, i32
  }
}

</mosaic_0001>

<llo_original>
// kernel: tpu_custom_call.1
$region0: #{tpu_custom_call.1}
  #allocation0 [shape = 'u32[]', space=smem, size = 0x4, offset = 0x4, fixed_abs, tag = 'smem constant byte address 0x4 - core index']
  #allocation1 [shape = 'u32[144,128]{1,0:T(1,128)}', space=vmem, size = 0x12000, scoped, tag = 'internal scratch']
  %s0 = inlined_call_operand.vmem [shape: f32[512,4], index: 0, kind: input, shape index: {}]
  %s1 = inlined_call_operand.vmem [shape: f32[4,128], index: 1, kind: input, shape index: {}]
  %s2 = inlined_call_operand.vmem [shape: f32[1,128], index: 2, kind: input, shape index: {}]
  %s3 = inlined_call_operand.vmem [shape: bf16[128,128], index: 3, kind: input, shape index: {}]
  %s4 = inlined_call_operand.vmem [shape: f32[1,128], index: 4, kind: input, shape index: {}]
  %s5 = inlined_call_operand.vmem [shape: bf16[2,128], index: 5, kind: input, shape index: {}]
  %s6 = inlined_call_operand.vmem [shape: f32[2,1], index: 6, kind: input, shape index: {}]
  %s7 = inlined_call_operand.hbm [shape: f32[2,512], index: 7, kind: output, shape index: {}]
  %s8 = sld [smem:[#allocation0]]
  $region38: #{tpu_custom_call.1} parent=0
    _
  %s10 = ssub.s32 1, %s8
  %s11 = scalar_select 0, %s10, %s8
  $region1: #{tpu_custom_call.1} parent=0
    #allocation2 [shape = 'u8[4096]{0}', space=vmem, size = 0x1000, scoped, tag = 'output window, operand 0, single buffered']
    #allocation3 [shape = 's32[1]{0}', space=sflag, size = 0x4, scoped, tag = 'scoped memory for tpu_custom_call.1']
    %12 = vsyncpa [#allocation3], 0
    // Predicated region
    $region2: #{tpu_custom_call.1} parent=1 // pred_check
      _
    $region3: #{tpu_custom_call.1} parent=1 // pred_check_branch
      %14 = sbr.rel (0) target = $region5
    $region4: #{tpu_custom_call.1} parent=1 // pred_region
      _
    $region5: #{tpu_custom_call.1} parent=1 // pred_fallthru
      _
    // Predicated region
    $region6: #{tpu_custom_call.1} parent=1 // pred_check
      _
    $region7: #{tpu_custom_call.1} parent=1 // pred_check_branch
      %16 = sbr.rel (0) target = $region9
    $region8: #{tpu_custom_call.1} parent=1 // pred_region
      _
    $region9: #{tpu_custom_call.1} parent=1 // pred_fallthru
      _
    // Predicated region
    $region10: #{tpu_custom_call.1} parent=1 // pred_check
      _
    $region11: #{tpu_custom_call.1} parent=1 // pred_check_branch
      %18 = sbr.rel (0) target = $region13
    $region12: #{tpu_custom_call.1} parent=1 // pred_region
      _
    $region13: #{tpu_custom_call.1} parent=1 // pred_fallthru
      _
    // Predicated region
    $region14: #{tpu_custom_call.1} parent=1 // pred_check
      _
    $region15: #{tpu_custom_call.1} parent=1 // pred_check_branch
      %20 = sbr.rel (0) target = $region17
    $region16: #{tpu_custom_call.1} parent=1 // pred_region
      _
    $region17: #{tpu_custom_call.1} parent=1 // pred_fallthru
      _
    // Predicated region
    $region18: #{tpu_custom_call.1} parent=1 // pred_check
      _
    $region19: #{tpu_custom_call.1} parent=1 // pred_check_branch
      %22 = sbr.rel (0) target = $region21
    $region20: #{tpu_custom_call.1} parent=1 // pred_region
      _
    $region21: #{tpu_custom_call.1} parent=1 // pred_fallthru
      _
    // Predicated region
    $region22: #{tpu_custom_call.1} parent=1 // pred_check
      _
    $region23: #{tpu_custom_call.1} parent=1 // pred_check_branch
      %24 = sbr.rel (0) target = $region25
    $region24: #{tpu_custom_call.1} parent=1 // pred_region
      _
    $region25: #{tpu_custom_call.1} parent=1 // pred_fallthru
      _
    // Predicated region
    $region26: #{tpu_custom_call.1} parent=1 // pred_check
      _
    $region27: #{tpu_custom_call.1} parent=1 // pred_check_branch
      %26 = sbr.rel (0) target = $region29
    $region28: #{tpu_custom_call.1} parent=1 // pred_region
      _
    $region29: #{tpu_custom_call.1} parent=1 // pred_fallthru
      _
    %v28 = vld [vmem:[%s0] sm:$0xff]
    %v29 = vld [vmem:[%s0 + $0x8] sm:$0xff]
    %v30 = vld [vmem:[%s0 + $0x10] sm:$0xff]
    %v31 = vld [vmem:[%s0 + $0x18] sm:$0xff]
    %v32 = vld [vmem:[%s0 + $0x20] sm:$0xff]
    %v33 = vld [vmem:[%s0 + $0x28] sm:$0xff]
    %v34 = vld [vmem:[%s0 + $0x30] sm:$0xff]
    %v35 = vld [vmem:[%s0 + $0x38] sm:$0xff]
    %v36 = vld [vmem:[%s0 + $0x40] sm:$0xff]
    %v37 = vld [vmem:[%s0 + $0x48] sm:$0xff]
    %v38 = vld [vmem:[%s0 + $0x50] sm:$0xff]
    %v39 = vld [vmem:[%s0 + $0x58] sm:$0xff]
    %v40 = vld [vmem:[%s0 + $0x60] sm:$0xff]
    %v41 = vld [vmem:[%s0 + $0x68] sm:$0xff]
    %v42 = vld [vmem:[%s0 + $0x70] sm:$0xff]
    %v43 = vld [vmem:[%s0 + $0x78] sm:$0xff]
    %v44 = vld [vmem:[%s0 + $0x80] sm:$0xff]
    %v45 = vld [vmem:[%s0 + $0x88] sm:$0xff]
    %v46 = vld [vmem:[%s0 + $0x90] sm:$0xff]
    %v47 = vld [vmem:[%s0 + $0x98] sm:$0xff]
    %v48 = vld [vmem:[%s0 + $0xa0] sm:$0xff]
    %v49 = vld [vmem:[%s0 + $0xa8] sm:$0xff]
    %v50 = vld [vmem:[%s0 + $0xb0] sm:$0xff]
    %v51 = vld [vmem:[%s0 + $0xb8] sm:$0xff]
    %v52 = vld [vmem:[%s0 + $0xc0] sm:$0xff]
    %v53 = vld [vmem:[%s0 + $0xc8] sm:$0xff]
    %v54 = vld [vmem:[%s0 + $0xd0] sm:$0xff]
    %v55 = vld [vmem:[%s0 + $0xd8] sm:$0xff]
    %v56 = vld [vmem:[%s0 + $0xe0] sm:$0xff]
    %v57 = vld [vmem:[%s0 + $0xe8] sm:$0xff]
    %v58 = vld [vmem:[%s0 + $0xf0] sm:$0xff]
    %v59 = vld [vmem:[%s0 + $0xf8] sm:$0xff]
    %v60 = vld [vmem:[%s0 + $0x100] sm:$0xff]
    %v61 = vld [vmem:[%s0 + $0x108] sm:$0xff]
    %v62 = vld [vmem:[%s0 + $0x110] sm:$0xff]
    %v63 = vld [vmem:[%s0 + $0x118] sm:$0xff]
    %v64 = vld [vmem:[%s0 + $0x120] sm:$0xff]
    %v65 = vld [vmem:[%s0 + $0x128] sm:$0xff]
    %v66 = vld [vmem:[%s0 + $0x130] sm:$0xff]
    %v67 = vld [vmem:[%s0 + $0x138] sm:$0xff]
    %v68 = vld [vmem:[%s0 + $0x140] sm:$0xff]
    %v69 = vld [vmem:[%s0 + $0x148] sm:$0xff]
    %v70 = vld [vmem:[%s0 + $0x150] sm:$0xff]
    %v71 = vld [vmem:[%s0 + $0x158] sm:$0xff]
    %v72 = vld [vmem:[%s0 + $0x160] sm:$0xff]
    %v73 = vld [vmem:[%s0 + $0x168] sm:$0xff]
    %v74 = vld [vmem:[%s0 + $0x170] sm:$0xff]
    %v75 = vld [vmem:[%s0 + $0x178] sm:$0xff]
    %v76 = vld [vmem:[%s0 + $0x180] sm:$0xff]
    %v77 = vld [vmem:[%s0 + $0x188] sm:$0xff]
    %v78 = vld [vmem:[%s0 + $0x190] sm:$0xff]
    %v79 = vld [vmem:[%s0 + $0x198] sm:$0xff]
    %v80 = vld [vmem:[%s0 + $0x1a0] sm:$0xff]
    %v81 = vld [vmem:[%s0 + $0x1a8] sm:$0xff]
    %v82 = vld [vmem:[%s0 + $0x1b0] sm:$0xff]
    %v83 = vld [vmem:[%s0 + $0x1b8] sm:$0xff]
    %v84 = vld [vmem:[%s0 + $0x1c0] sm:$0xff]
    %v85 = vld [vmem:[%s0 + $0x1c8] sm:$0xff]
    %v86 = vld [vmem:[%s0 + $0x1d0] sm:$0xff]
    %v87 = vld [vmem:[%s0 + $0x1d8] sm:$0xff]
    %v88 = vld [vmem:[%s0 + $0x1e0] sm:$0xff]
    %v89 = vld [vmem:[%s0 + $0x1e8] sm:$0xff]
    %v90 = vld [vmem:[%s0 + $0x1f0] sm:$0xff]
    %v91 = vld [vmem:[%s0 + $0x1f8] sm:$0xff]
    %v92 = vld [vmem:[%s1] sm:$0xf]
    %v93 = vld [vmem:[%s2] sm:$0x1]
    %95 = vset.pattern.permute.xlu0 0
    %96 = vperm.xlu0 %95, %v28
    %v97 = vpop.permute.xlu0 %96
    %100 = vset.pattern.permute.xlu0 0
    %101 = vperm.xlu0 %100, %v29
    %v102 = vpop.permute.xlu0 %101
    %105 = vset.pattern.permute.xlu0 0
    %106 = vperm.xlu0 %105, %v30
    %v107 = vpop.permute.xlu0 %106
    %110 = vset.pattern.permute.xlu0 0
    %111 = vperm.xlu0 %110, %v31
    %v112 = vpop.permute.xlu0 %111
    %115 = vset.pattern.permute.xlu0 0
    %116 = vperm.xlu0 %115, %v32
    %v117 = vpop.permute.xlu0 %116
    %120 = vset.pattern.permute.xlu0 0
    %121 = vperm.xlu0 %120, %v33
    %v122 = vpop.permute.xlu0 %121
    %125 = vset.pattern.permute.xlu0 0
    %126 = vperm.xlu0 %125, %v34
    %v127 = vpop.permute.xlu0 %126
    %130 = vset.pattern.permute.xlu0 0
    %131 = vperm.xlu0 %130, %v35
    %v132 = vpop.permute.xlu0 %131
    %135 = vset.pattern.permute.xlu0 0
    %136 = vperm.xlu0 %135, %v36
    %v137 = vpop.permute.xlu0 %136
    %140 = vset.pattern.permute.xlu0 0
    %141 = vperm.xlu0 %140, %v37
    %v142 = vpop.permute.xlu0 %141
    %145 = vset.pattern.permute.xlu0 0
    %146 = vperm.xlu0 %145, %v38
    %v147 = vpop.permute.xlu0 %146
    %150 = vset.pattern.permute.xlu0 0
    %151 = vperm.xlu0 %150, %v39
    %v152 = vpop.permute.xlu0 %151
    %155 = vset.pattern.permute.xlu0 0
    %156 = vperm.xlu0 %155, %v40
    %v157 = vpop.permute.xlu0 %156
    %160 = vset.pattern.permute.xlu0 0
    %161 = vperm.xlu0 %160, %v41
    %v162 = vpop.permute.xlu0 %161
    %165 = vset.pattern.permute.xlu0 0
    %166 = vperm.xlu0 %165, %v42
    %v167 = vpop.permute.xlu0 %166
    %170 = vset.pattern.permute.xlu0 0
    %171 = vperm.xlu0 %170, %v43
    %v172 = vpop.permute.xlu0 %171
    %175 = vset.pattern.permute.xlu0 0
    %176 = vperm.xlu0 %175, %v44
    %v177 = vpop.permute.xlu0 %176
    %180 = vset.pattern.permute.xlu0 0
    %181 = vperm.xlu0 %180, %v45
    %v182 = vpop.permute.xlu0 %181
    %185 = vset.pattern.permute.xlu0 0
    %186 = vperm.xlu0 %185, %v46
    %v187 = vpop.permute.xlu0 %186
    %190 = vset.pattern.permute.xlu0 0
    %191 = vperm.xlu0 %190, %v47
    %v192 = vpop.permute.xlu0 %191
    %195 = vset.pattern.permute.xlu0 0
    %196 = vperm.xlu0 %195, %v48
    %v197 = vpop.permute.xlu0 %196
    %200 = vset.pattern.permute.xlu0 0
    %201 = vperm.xlu0 %200, %v49
    %v202 = vpop.permute.xlu0 %201
    %205 = vset.pattern.permute.xlu0 0
    %206 = vperm.xlu0 %205, %v50
    %v207 = vpop.permute.xlu0 %206
    %210 = vset.pattern.permute.xlu0 0
    %211 = vperm.xlu0 %210, %v51
    %v212 = vpop.permute.xlu0 %211
    %215 = vset.pattern.permute.xlu0 0
    %216 = vperm.xlu0 %215, %v52
    %v217 = vpop.permute.xlu0 %216
    %220 = vset.pattern.permute.xlu0 0
    %221 = vperm.xlu0 %220, %v53
    %v222 = vpop.permute.xlu0 %221
    %225 = vset.pattern.permute.xlu0 0
    %226 = vperm.xlu0 %225, %v54
    %v227 = vpop.permute.xlu0 %226
    %230 = vset.pattern.permute.xlu0 0
    %231 = vperm.xlu0 %230, %v55
    %v232 = vpop.permute.xlu0 %231
    %235 = vset.pattern.permute.xlu0 0
    %236 = vperm.xlu0 %235, %v56
    %v237 = vpop.permute.xlu0 %236
    %240 = vset.pattern.permute.xlu0 0
    %241 = vperm.xlu0 %240, %v57
    %v242 = vpop.permute.xlu0 %241
    %245 = vset.pattern.permute.xlu0 0
    %246 = vperm.xlu0 %245, %v58
    %v247 = vpop.permute.xlu0 %246
    %250 = vset.pattern.permute.xlu0 0
    %251 = vperm.xlu0 %250, %v59
    %v252 = vpop.permute.xlu0 %251
    %255 = vset.pattern.permute.xlu0 0
    %256 = vperm.xlu0 %255, %v60
    %v257 = vpop.permute.xlu0 %256
    %260 = vset.pattern.permute.xlu0 0
    %261 = vperm.xlu0 %260, %v61
    %v262 = vpop.permute.xlu0 %261
    %265 = vset.pattern.permute.xlu0 0
    %266 = vperm.xlu0 %265, %v62
    %v267 = vpop.permute.xlu0 %266
    %270 = vset.pattern.permute.xlu0 0
    %271 = vperm.xlu0 %270, %v63
    %v272 = vpop.permute.xlu0 %271
    %275 = vset.pattern.permute.xlu0 0
    %276 = vperm.xlu0 %275, %v64
    %v277 = vpop.permute.xlu0 %276
    %280 = vset.pattern.permute.xlu0 0
    %281 = vperm.xlu0 %280, %v65
    %v282 = vpop.permute.xlu0 %281
    %285 = vset.pattern.permute.xlu0 0
    %286 = vperm.xlu0 %285, %v66
    %v287 = vpop.permute.xlu0 %286
    %290 = vset.pattern.permute.xlu0 0
    %291 = vperm.xlu0 %290, %v67
    %v292 = vpop.permute.xlu0 %291
    %295 = vset.pattern.permute.xlu0 0
    %296 = vperm.xlu0 %295, %v68
    %v297 = vpop.permute.xlu0 %296
    %300 = vset.pattern.permute.xlu0 0
    %301 = vperm.xlu0 %300, %v69
    %v302 = vpop.permute.xlu0 %301
    %305 = vset.pattern.permute.xlu0 0
    %306 = vperm.xlu0 %305, %v70
    %v307 = vpop.permute.xlu0 %306
    %310 = vset.pattern.permute.xlu0 0
    %311 = vperm.xlu0 %310, %v71
    %v312 = vpop.permute.xlu0 %311
    %315 = vset.pattern.permute.xlu0 0
    %316 = vperm.xlu0 %315, %v72
    %v317 = vpop.permute.xlu0 %316
    %320 = vset.pattern.permute.xlu0 0
    %321 = vperm.xlu0 %320, %v73
    %v322 = vpop.permute.xlu0 %321
    %325 = vset.pattern.permute.xlu0 0
    %326 = vperm.xlu0 %325, %v74
    %v327 = vpop.permute.xlu0 %326
    %330 = vset.pattern.permute.xlu0 0
    %331 = vperm.xlu0 %330, %v75
    %v332 = vpop.permute.xlu0 %331
    %335 = vset.pattern.permute.xlu0 0
    %336 = vperm.xlu0 %335, %v76
    %v337 = vpop.permute.xlu0 %336
    %340 = vset.pattern.permute.xlu0 0
    %341 = vperm.xlu0 %340, %v77
    %v342 = vpop.permute.xlu0 %341
    %345 = vset.pattern.permute.xlu0 0
    %346 = vperm.xlu0 %345, %v78
    %v347 = vpop.permute.xlu0 %346
    %350 = vset.pattern.permute.xlu0 0
    %351 = vperm.xlu0 %350, %v79
    %v352 = vpop.permute.xlu0 %351
    %355 = vset.pattern.permute.xlu0 0
    %356 = vperm.xlu0 %355, %v80
    %v357 = vpop.permute.xlu0 %356
    %360 = vset.pattern.permute.xlu0 0
    %361 = vperm.xlu0 %360, %v81
    %v362 = vpop.permute.xlu0 %361
    %365 = vset.pattern.permute.xlu0 0
    %366 = vperm.xlu0 %365, %v82
    %v367 = vpop.permute.xlu0 %366
    %370 = vset.pattern.permute.xlu0 0
    %371 = vperm.xlu0 %370, %v83
    %v372 = vpop.permute.xlu0 %371
    %375 = vset.pattern.permute.xlu0 0
    %376 = vperm.xlu0 %375, %v84
    %v377 = vpop.permute.xlu0 %376
    %380 = vset.pattern.permute.xlu0 0
    %381 = vperm.xlu0 %380, %v85
    %v382 = vpop.permute.xlu0 %381
    %385 = vset.pattern.permute.xlu0 0
    %386 = vperm.xlu0 %385, %v86
    %v387 = vpop.permute.xlu0 %386
    %390 = vset.pattern.permute.xlu0 0
    %391 = vperm.xlu0 %390, %v87
    %v392 = vpop.permute.xlu0 %391
    %395 = vset.pattern.permute.xlu0 0
    %396 = vperm.xlu0 %395, %v88
    %v397 = vpop.permute.xlu0 %396
    %400 = vset.pattern.permute.xlu0 0
    %401 = vperm.xlu0 %400, %v89
    %v402 = vpop.permute.xlu0 %401
    %405 = vset.pattern.permute.xlu0 0
    %406 = vperm.xlu0 %405, %v90
    %v407 = vpop.permute.xlu0 %406
    %410 = vset.pattern.permute.xlu0 0
    %411 = vperm.xlu0 %410, %v91
    %v412 = vpop.permute.xlu0 %411
    %v414 = vlaneseq
    %v415 = vshrl.u32 %v414, 7
    %v416 = vsub.s32 0, %v415
    %v417 = vrot.slane %v92, %v416
    %v418 = vmul.f32 %v97, %v417
    %v419 = vmul.f32 %v102, %v417
    %v420 = vmul.f32 %v107, %v417
    %v421 = vmul.f32 %v112, %v417
    %v422 = vmul.f32 %v117, %v417
    %v423 = vmul.f32 %v122, %v417
    %v424 = vmul.f32 %v127, %v417
    %v425 = vmul.f32 %v132, %v417
    %v426 = vmul.f32 %v137, %v417
    %v427 = vmul.f32 %v142, %v417
    %v428 = vmul.f32 %v147, %v417
    %v429 = vmul.f32 %v152, %v417
    %v430 = vmul.f32 %v157, %v417
    %v431 = vmul.f32 %v162, %v417
    %v432 = vmul.f32 %v167, %v417
    %v433 = vmul.f32 %v172, %v417
    %v434 = vmul.f32 %v177, %v417
    %v435 = vmul.f32 %v182, %v417
    %v436 = vmul.f32 %v187, %v417
    %v437 = vmul.f32 %v192, %v417
    %v438 = vmul.f32 %v197, %v417
    %v439 = vmul.f32 %v202, %v417
    %v440 = vmul.f32 %v207, %v417
    %v441 = vmul.f32 %v212, %v417
    %v442 = vmul.f32 %v217, %v417
    %v443 = vmul.f32 %v222, %v417
    %v444 = vmul.f32 %v227, %v417
    %v445 = vmul.f32 %v232, %v417
    %v446 = vmul.f32 %v237, %v417
    %v447 = vmul.f32 %v242, %v417
    %v448 = vmul.f32 %v247, %v417
    %v449 = vmul.f32 %v252, %v417
    %v450 = vmul.f32 %v257, %v417
    %v451 = vmul.f32 %v262, %v417
    %v452 = vmul.f32 %v267, %v417
    %v453 = vmul.f32 %v272, %v417
    %v454 = vmul.f32 %v277, %v417
    %v455 = vmul.f32 %v282, %v417
    %v456 = vmul.f32 %v287, %v417
    %v457 = vmul.f32 %v292, %v417
    %v458 = vmul.f32 %v297, %v417
    %v459 = vmul.f32 %v302, %v417
    %v460 = vmul.f32 %v307, %v417
    %v461 = vmul.f32 %v312, %v417
    %v462 = vmul.f32 %v317, %v417
    %v463 = vmul.f32 %v322, %v417
    %v464 = vmul.f32 %v327, %v417
    %v465 = vmul.f32 %v332, %v417
    %v466 = vmul.f32 %v337, %v417
    %v467 = vmul.f32 %v342, %v417
    %v468 = vmul.f32 %v347, %v417
    %v469 = vmul.f32 %v352, %v417
    %v470 = vmul.f32 %v357, %v417
    %v471 = vmul.f32 %v362, %v417
    %v472 = vmul.f32 %v367, %v417
    %v473 = vmul.f32 %v372, %v417
    %v474 = vmul.f32 %v377, %v417
    %v475 = vmul.f32 %v382, %v417
    %v476 = vmul.f32 %v387, %v417
    %v477 = vmul.f32 %v392, %v417
    %v478 = vmul.f32 %v397, %v417
    %v479 = vmul.f32 %v402, %v417
    %v480 = vmul.f32 %v407, %v417
    %v481 = vmul.f32 %v412, %v417
    %v483 = vlaneseq
    %v484 = vshrl.u32 %v483, 7
    %v485 = vsub.s32 0, %v484
    %v486 = vrot.slane %v93, %v485
    %v488 = vadd.f32 %v486, %v418
    %v489 = vadd.f32 %v486, %v419
    %v490 = vadd.f32 %v486, %v420
    %v491 = vadd.f32 %v486, %v421
    %v492 = vadd.f32 %v486, %v422
    %v493 = vadd.f32 %v486, %v423
    %v494 = vadd.f32 %v486, %v424
    %v495 = vadd.f32 %v486, %v425
    %v496 = vadd.f32 %v486, %v426
    %v497 = vadd.f32 %v486, %v427
    %v498 = vadd.f32 %v486, %v428
    %v499 = vadd.f32 %v486, %v429
    %v500 = vadd.f32 %v486, %v430
    %v501 = vadd.f32 %v486, %v431
    %v502 = vadd.f32 %v486, %v432
    %v503 = vadd.f32 %v486, %v433
    %v504 = vadd.f32 %v486, %v434
    %v505 = vadd.f32 %v486, %v435
    %v506 = vadd.f32 %v486, %v436
    %v507 = vadd.f32 %v486, %v437
    %v508 = vadd.f32 %v486, %v438
    %v509 = vadd.f32 %v486, %v439
    %v510 = vadd.f32 %v486, %v440
    %v511 = vadd.f32 %v486, %v441
    %v512 = vadd.f32 %v486, %v442
    %v513 = vadd.f32 %v486, %v443
    %v514 = vadd.f32 %v486, %v444
    %v515 = vadd.f32 %v486, %v445
    %v516 = vadd.f32 %v486, %v446
    %v517 = vadd.f32 %v486, %v447
    %v518 = vadd.f32 %v486, %v448
    %v519 = vadd.f32 %v486, %v449
    %v520 = vadd.f32 %v486, %v450
    %v521 = vadd.f32 %v486, %v451
    %v522 = vadd.f32 %v486, %v452
    %v523 = vadd.f32 %v486, %v453
    %v524 = vadd.f32 %v486, %v454
    %v525 = vadd.f32 %v486, %v455
    %v526 = vadd.f32 %v486, %v456
    %v527 = vadd.f32 %v486, %v457
    %v528 = vadd.f32 %v486, %v458
    %v529 = vadd.f32 %v486, %v459
    %v530 = vadd.f32 %v486, %v460
    %v531 = vadd.f32 %v486, %v461
    %v532 = vadd.f32 %v486, %v462
    %v533 = vadd.f32 %v486, %v463
    %v534 = vadd.f32 %v486, %v464
    %v535 = vadd.f32 %v486, %v465
    %v536 = vadd.f32 %v486, %v466
    %v537 = vadd.f32 %v486, %v467
    %v538 = vadd.f32 %v486, %v468
    %v539 = vadd.f32 %v486, %v469
    %v540 = vadd.f32 %v486, %v470
    %v541 = vadd.f32 %v486, %v471
    %v542 = vadd.f32 %v486, %v472
    %v543 = vadd.f32 %v486, %v473
    %v544 = vadd.f32 %v486, %v474
    %v545 = vadd.f32 %v486, %v475
    %v546 = vadd.f32 %v486, %v476
    %v547 = vadd.f32 %v486, %v477
    %v548 = vadd.f32 %v486, %v478
    %v549 = vadd.f32 %v486, %v479
    %v550 = vadd.f32 %v486, %v480
    %v551 = vadd.f32 %v486, %v481
    %552 = vset.pattern.permute.xlu0 1
    %553 = vperm.xlu0 %552, %v28
    %v554 = vpop.permute.xlu0 %553
    %556 = vset.pattern.permute.xlu0 1
    %557 = vperm.xlu0 %556, %v29
    %v558 = vpop.permute.xlu0 %557
    %560 = vset.pattern.permute.xlu0 1
    %561 = vperm.xlu0 %560, %v30
    %v562 = vpop.permute.xlu0 %561
    %564 = vset.pattern.permute.xlu0 1
    %565 = vperm.xlu0 %564, %v31
    %v566 = vpop.permute.xlu0 %565
    %568 = vset.pattern.permute.xlu0 1
    %569 = vperm.xlu0 %568, %v32
    %v570 = vpop.permute.xlu0 %569
    %572 = vset.pattern.permute.xlu0 1
    %573 = vperm.xlu0 %572, %v33
    %v574 = vpop.permute.xlu0 %573
    %576 = vset.pattern.permute.xlu0 1
    %577 = vperm.xlu0 %576, %v34
    %v578 = vpop.permute.xlu0 %577
    %580 = vset.pattern.permute.xlu0 1
    %581 = vperm.xlu0 %580, %v35
    %v582 = vpop.permute.xlu0 %581
    %584 = vset.pattern.permute.xlu0 1
    %585 = vperm.xlu0 %584, %v36
    %v586 = vpop.permute.xlu0 %585
    %588 = vset.pattern.permute.xlu0 1
    %589 = vperm.xlu0 %588, %v37
    %v590 = vpop.permute.xlu0 %589
    %592 = vset.pattern.permute.xlu0 1
    %593 = vperm.xlu0 %592, %v38
    %v594 = vpop.permute.xlu0 %593
    %596 = vset.pattern.permute.xlu0 1
    %597 = vperm.xlu0 %596, %v39
    %v598 = vpop.permute.xlu0 %597
    %600 = vset.pattern.permute.xlu0 1
    %601 = vperm.xlu0 %600, %v40
    %v602 = vpop.permute.xlu0 %601
    %604 = vset.pattern.permute.xlu0 1
    %605 = vperm.xlu0 %604, %v41
    %v606 = vpop.permute.xlu0 %605
    %608 = vset.pattern.permute.xlu0 1
    %609 = vperm.xlu0 %608, %v42
    %v610 = vpop.permute.xlu0 %609
    %612 = vset.pattern.permute.xlu0 1
    %613 = vperm.xlu0 %612, %v43
    %v614 = vpop.permute.xlu0 %613
    %616 = vset.pattern.permute.xlu0 1
    %617 = vperm.xlu0 %616, %v44
    %v618 = vpop.permute.xlu0 %617
    %620 = vset.pattern.permute.xlu0 1
    %621 = vperm.xlu0 %620, %v45
    %v622 = vpop.permute.xlu0 %621
    %624 = vset.pattern.permute.xlu0 1
    %625 = vperm.xlu0 %624, %v46
    %v626 = vpop.permute.xlu0 %625
    %628 = vset.pattern.permute.xlu0 1
    %629 = vperm.xlu0 %628, %v47
    %v630 = vpop.permute.xlu0 %629
    %632 = vset.pattern.permute.xlu0 1
    %633 = vperm.xlu0 %632, %v48
    %v634 = vpop.permute.xlu0 %633
    %636 = vset.pattern.permute.xlu0 1
    %637 = vperm.xlu0 %636, %v49
    %v638 = vpop.permute.xlu0 %637
    %640 = vset.pattern.permute.xlu0 1
    %641 = vperm.xlu0 %640, %v50
    %v642 = vpop.permute.xlu0 %641
    %644 = vset.pattern.permute.xlu0 1
    %645 = vperm.xlu0 %644, %v51
    %v646 = vpop.permute.xlu0 %645
    %648 = vset.pattern.permute.xlu0 1
    %649 = vperm.xlu0 %648, %v52
    %v650 = vpop.permute.xlu0 %649
    %652 = vset.pattern.permute.xlu0 1
    %653 = vperm.xlu0 %652, %v53
    %v654 = vpop.permute.xlu0 %653
    %656 = vset.pattern.permute.xlu0 1
    %657 = vperm.xlu0 %656, %v54
    %v658 = vpop.permute.xlu0 %657
    %660 = vset.pattern.permute.xlu0 1
    %661 = vperm.xlu0 %660, %v55
    %v662 = vpop.permute.xlu0 %661
    %664 = vset.pattern.permute.xlu0 1
    %665 = vperm.xlu0 %664, %v56
    %v666 = vpop.permute.xlu0 %665
    %668 = vset.pattern.permute.xlu0 1
    %669 = vperm.xlu0 %668, %v57
    %v670 = vpop.permute.xlu0 %669
    %672 = vset.pattern.permute.xlu0 1
    %673 = vperm.xlu0 %672, %v58
    %v674 = vpop.permute.xlu0 %673
    %676 = vset.pattern.permute.xlu0 1
    %677 = vperm.xlu0 %676, %v59
    %v678 = vpop.permute.xlu0 %677
    %680 = vset.pattern.permute.xlu0 1
    %681 = vperm.xlu0 %680, %v60
    %v682 = vpop.permute.xlu0 %681
    %684 = vset.pattern.permute.xlu0 1
    %685 = vperm.xlu0 %684, %v61
    %v686 = vpop.permute.xlu0 %685
    %688 = vset.pattern.permute.xlu0 1
    %689 = vperm.xlu0 %688, %v62
    %v690 = vpop.permute.xlu0 %689
    %692 = vset.pattern.permute.xlu0 1
    %693 = vperm.xlu0 %692, %v63
    %v694 = vpop.permute.xlu0 %693
    %696 = vset.pattern.permute.xlu0 1
    %697 = vperm.xlu0 %696, %v64
    %v698 = vpop.permute.xlu0 %697
    %700 = vset.pattern.permute.xlu0 1
    %701 = vperm.xlu0 %700, %v65
    %v702 = vpop.permute.xlu0 %701
    %704 = vset.pattern.permute.xlu0 1
    %705 = vperm.xlu0 %704, %v66
    %v706 = vpop.permute.xlu0 %705
    %708 = vset.pattern.permute.xlu0 1
    %709 = vperm.xlu0 %708, %v67
    %v710 = vpop.permute.xlu0 %709
    %712 = vset.pattern.permute.xlu0 1
    %713 = vperm.xlu0 %712, %v68
    %v714 = vpop.permute.xlu0 %713
    %716 = vset.pattern.permute.xlu0 1
    %717 = vperm.xlu0 %716, %v69
    %v718 = vpop.permute.xlu0 %717
    %720 = vset.pattern.permute.xlu0 1
    %721 = vperm.xlu0 %720, %v70
    %v722 = vpop.permute.xlu0 %721
    %724 = vset.pattern.permute.xlu0 1
    %725 = vperm.xlu0 %724, %v71
    %v726 = vpop.permute.xlu0 %725
    %728 = vset.pattern.permute.xlu0 1
    %729 = vperm.xlu0 %728, %v72
    %v730 = vpop.permute.xlu0 %729
    %732 = vset.pattern.permute.xlu0 1
    %733 = vperm.xlu0 %732, %v73
    %v734 = vpop.permute.xlu0 %733
    %736 = vset.pattern.permute.xlu0 1
    %737 = vperm.xlu0 %736, %v74
    %v738 = vpop.permute.xlu0 %737
    %740 = vset.pattern.permute.xlu0 1
    %741 = vperm.xlu0 %740, %v75
    %v742 = vpop.permute.xlu0 %741
    %744 = vset.pattern.permute.xlu0 1
    %745 = vperm.xlu0 %744, %v76
    %v746 = vpop.permute.xlu0 %745
    %748 = vset.pattern.permute.xlu0 1
    %749 = vperm.xlu0 %748, %v77
    %v750 = vpop.permute.xlu0 %749
    %752 = vset.pattern.permute.xlu0 1
    %753 = vperm.xlu0 %752, %v78
    %v754 = vpop.permute.xlu0 %753
    %756 = vset.pattern.permute.xlu0 1
    %757 = vperm.xlu0 %756, %v79
    %v758 = vpop.permute.xlu0 %757
    %760 = vset.pattern.permute.xlu0 1
    %761 = vperm.xlu0 %760, %v80
    %v762 = vpop.permute.xlu0 %761
    %764 = vset.pattern.permute.xlu0 1
    %765 = vperm.xlu0 %764, %v81
    %v766 = vpop.permute.xlu0 %765
    %768 = vset.pattern.permute.xlu0 1
    %769 = vperm.xlu0 %768, %v82
    %v770 = vpop.permute.xlu0 %769
    %772 = vset.pattern.permute.xlu0 1
    %773 = vperm.xlu0 %772, %v83
    %v774 = vpop.permute.xlu0 %773
    %776 = vset.pattern.permute.xlu0 1
    %777 = vperm.xlu0 %776, %v84
    %v778 = vpop.permute.xlu0 %777
    %780 = vset.pattern.permute.xlu0 1
    %781 = vperm.xlu0 %780, %v85
    %v782 = vpop.permute.xlu0 %781
    %784 = vset.pattern.permute.xlu0 1
    %785 = vperm.xlu0 %784, %v86
    %v786 = vpop.permute.xlu0 %785
    %788 = vset.pattern.permute.xlu0 1
    %789 = vperm.xlu0 %788, %v87
    %v790 = vpop.permute.xlu0 %789
    %792 = vset.pattern.permute.xlu0 1
    %793 = vperm.xlu0 %792, %v88
    %v794 = vpop.permute.xlu0 %793
    %796 = vset.pattern.permute.xlu0 1
    %797 = vperm.xlu0 %796, %v89
    %v798 = vpop.permute.xlu0 %797
    %800 = vset.pattern.permute.xlu0 1
    %801 = vperm.xlu0 %800, %v90
    %v802 = vpop.permute.xlu0 %801
    %804 = vset.pattern.permute.xlu0 1
    %805 = vperm.xlu0 %804, %v91
    %v806 = vpop.permute.xlu0 %805
    %v808 = vlaneseq
    %v809 = vshrl.u32 %v808, 7
    %v810 = vsub.s32 1, %v809
    %v811 = vrot.slane %v92, %v810
    %v812 = vmul.f32 %v554, %v811
    %v813 = vmul.f32 %v558, %v811
    %v814 = vmul.f32 %v562, %v811
    %v815 = vmul.f32 %v566, %v811
    %v816 = vmul.f32 %v570, %v811
    %v817 = vmul.f32 %v574, %v811
    %v818 = vmul.f32 %v578, %v811
    %v819 = vmul.f32 %v582, %v811
    %v820 = vmul.f32 %v586, %v811
    %v821 = vmul.f32 %v590, %v811
    %v822 = vmul.f32 %v594, %v811
    %v823 = vmul.f32 %v598, %v811
    %v824 = vmul.f32 %v602, %v811
    %v825 = vmul.f32 %v606, %v811
    %v826 = vmul.f32 %v610, %v811
    %v827 = vmul.f32 %v614, %v811
    %v828 = vmul.f32 %v618, %v811
    %v829 = vmul.f32 %v622, %v811
    %v830 = vmul.f32 %v626, %v811
    %v831 = vmul.f32 %v630, %v811
    %v832 = vmul.f32 %v634, %v811
    %v833 = vmul.f32 %v638, %v811
    %v834 = vmul.f32 %v642, %v811
    %v835 = vmul.f32 %v646, %v811
    %v836 = vmul.f32 %v650, %v811
    %v837 = vmul.f32 %v654, %v811
    %v838 = vmul.f32 %v658, %v811
    %v839 = vmul.f32 %v662, %v811
    %v840 = vmul.f32 %v666, %v811
    %v841 = vmul.f32 %v670, %v811
    %v842 = vmul.f32 %v674, %v811
    %v843 = vmul.f32 %v678, %v811
    %v844 = vmul.f32 %v682, %v811
    %v845 = vmul.f32 %v686, %v811
    %v846 = vmul.f32 %v690, %v811
    %v847 = vmul.f32 %v694, %v811
    %v848 = vmul.f32 %v698, %v811
    %v849 = vmul.f32 %v702, %v811
    %v850 = vmul.f32 %v706, %v811
    %v851 = vmul.f32 %v710, %v811
    %v852 = vmul.f32 %v714, %v811
    %v853 = vmul.f32 %v718, %v811
    %v854 = vmul.f32 %v722, %v811
    %v855 = vmul.f32 %v726, %v811
    %v856 = vmul.f32 %v730, %v811
    %v857 = vmul.f32 %v734, %v811
    %v858 = vmul.f32 %v738, %v811
    %v859 = vmul.f32 %v742, %v811
    %v860 = vmul.f32 %v746, %v811
    %v861 = vmul.f32 %v750, %v811
    %v862 = vmul.f32 %v754, %v811
    %v863 = vmul.f32 %v758, %v811
    %v864 = vmul.f32 %v762, %v811
    %v865 = vmul.f32 %v766, %v811
    %v866 = vmul.f32 %v770, %v811
    %v867 = vmul.f32 %v774, %v811
    %v868 = vmul.f32 %v778, %v811
    %v869 = vmul.f32 %v782, %v811
    %v870 = vmul.f32 %v786, %v811
    %v871 = vmul.f32 %v790, %v811
    %v872 = vmul.f32 %v794, %v811
    %v873 = vmul.f32 %v798, %v811
    %v874 = vmul.f32 %v802, %v811
    %v875 = vmul.f32 %v806, %v811
    %v876 = vadd.f32 %v488, %v812
    %v877 = vadd.f32 %v489, %v813
    %v878 = vadd.f32 %v490, %v814
    %v879 = vadd.f32 %v491, %v815
    %v880 = vadd.f32 %v492, %v816
    %v881 = vadd.f32 %v493, %v817
    %v882 = vadd.f32 %v494, %v818
    %v883 = vadd.f32 %v495, %v819
    %v884 = vadd.f32 %v496, %v820
    %v885 = vadd.f32 %v497, %v821
    %v886 = vadd.f32 %v498, %v822
    %v887 = vadd.f32 %v499, %v823
    %v888 = vadd.f32 %v500, %v824
    %v889 = vadd.f32 %v501, %v825
    %v890 = vadd.f32 %v502, %v826
    %v891 = vadd.f32 %v503, %v827
    %v892 = vadd.f32 %v504, %v828
    %v893 = vadd.f32 %v505, %v829
    %v894 = vadd.f32 %v506, %v830
    %v895 = vadd.f32 %v507, %v831
    %v896 = vadd.f32 %v508, %v832
    %v897 = vadd.f32 %v509, %v833
    %v898 = vadd.f32 %v510, %v834
    %v899 = vadd.f32 %v511, %v835
    %v900 = vadd.f32 %v512, %v836
    %v901 = vadd.f32 %v513, %v837
    %v902 = vadd.f32 %v514, %v838
    %v903 = vadd.f32 %v515, %v839
    %v904 = vadd.f32 %v516, %v840
    %v905 = vadd.f32 %v517, %v841
    %v906 = vadd.f32 %v518, %v842
    %v907 = vadd.f32 %v519, %v843
    %v908 = vadd.f32 %v520, %v844
    %v909 = vadd.f32 %v521, %v845
    %v910 = vadd.f32 %v522, %v846
    %v911 = vadd.f32 %v523, %v847
    %v912 = vadd.f32 %v524, %v848
    %v913 = vadd.f32 %v525, %v849
    %v914 = vadd.f32 %v526, %v850
    %v915 = vadd.f32 %v527, %v851
    %v916 = vadd.f32 %v528, %v852
    %v917 = vadd.f32 %v529, %v853
    %v918 = vadd.f32 %v530, %v854
    %v919 = vadd.f32 %v531, %v855
    %v920 = vadd.f32 %v532, %v856
    %v921 = vadd.f32 %v533, %v857
    %v922 = vadd.f32 %v534, %v858
    %v923 = vadd.f32 %v535, %v859
    %v924 = vadd.f32 %v536, %v860
    %v925 = vadd.f32 %v537, %v861
    %v926 = vadd.f32 %v538, %v862
    %v927 = vadd.f32 %v539, %v863
    %v928 = vadd.f32 %v540, %v864
    %v929 = vadd.f32 %v541, %v865
    %v930 = vadd.f32 %v542, %v866
    %v931 = vadd.f32 %v543, %v867
    %v932 = vadd.f32 %v544, %v868
    %v933 = vadd.f32 %v545, %v869
    %v934 = vadd.f32 %v546, %v870
    %v935 = vadd.f32 %v547, %v871
    %v936 = vadd.f32 %v548, %v872
    %v937 = vadd.f32 %v549, %v873
    %v938 = vadd.f32 %v550, %v874
    %v939 = vadd.f32 %v551, %v875
    %940 = vset.pattern.permute.xlu0 2
    %941 = vperm.xlu0 %940, %v28
    %v942 = vpop.permute.xlu0 %941
    %944 = vset.pattern.permute.xlu0 2
    %945 = vperm.xlu0 %944, %v29
    %v946 = vpop.permute.xlu0 %945
    %948 = vset.pattern.permute.xlu0 2
    %949 = vperm.xlu0 %948, %v30
    %v950 = vpop.permute.xlu0 %949
    %952 = vset.pattern.permute.xlu0 2
    %953 = vperm.xlu0 %952, %v31
    %v954 = vpop.permute.xlu0 %953
    %956 = vset.pattern.permute.xlu0 2
    %957 = vperm.xlu0 %956, %v32
    %v958 = vpop.permute.xlu0 %957
    %960 = vset.pattern.permute.xlu0 2
    %961 = vperm.xlu0 %960, %v33
    %v962 = vpop.permute.xlu0 %961
    %964 = vset.pattern.permute.xlu0 2
    %965 = vperm.xlu0 %964, %v34
    %v966 = vpop.permute.xlu0 %965
    %968 = vset.pattern.permute.xlu0 2
    %969 = vperm.xlu0 %968, %v35
    %v970 = vpop.permute.xlu0 %969
    %972 = vset.pattern.permute.xlu0 2
    %973 = vperm.xlu0 %972, %v36
    %v974 = vpop.permute.xlu0 %973
    %976 = vset.pattern.permute.xlu0 2
    %977 = vperm.xlu0 %976, %v37
    %v978 = vpop.permute.xlu0 %977
    %980 = vset.pattern.permute.xlu0 2
    %981 = vperm.xlu0 %980, %v38
    %v982 = vpop.permute.xlu0 %981
    %984 = vset.pattern.permute.xlu0 2
    %985 = vperm.xlu0 %984, %v39
    %v986 = vpop.permute.xlu0 %985
    %988 = vset.pattern.permute.xlu0 2
    %989 = vperm.xlu0 %988, %v40
    %v990 = vpop.permute.xlu0 %989
    %992 = vset.pattern.permute.xlu0 2
    %993 = vperm.xlu0 %992, %v41
    %v994 = vpop.permute.xlu0 %993
    %996 = vset.pattern.permute.xlu0 2
    %997 = vperm.xlu0 %996, %v42
    %v998 = vpop.permute.xlu0 %997
    %1000 = vset.pattern.permute.xlu0 2
    %1001 = vperm.xlu0 %1000, %v43
    %v1002 = vpop.permute.xlu0 %1001
    %1004 = vset.pattern.permute.xlu0 2
    %1005 = vperm.xlu0 %1004, %v44
    %v1006 = vpop.permute.xlu0 %1005
    %1008 = vset.pattern.permute.xlu0 2
    %1009 = vperm.xlu0 %1008, %v45
    %v1010 = vpop.permute.xlu0 %1009
    %1012 = vset.pattern.permute.xlu0 2
    %1013 = vperm.xlu0 %1012, %v46
    %v1014 = vpop.permute.xlu0 %1013
    %1016 = vset.pattern.permute.xlu0 2
    %1017 = vperm.xlu0 %1016, %v47
    %v1018 = vpop.permute.xlu0 %1017
    %1020 = vset.pattern.permute.xlu0 2
    %1021 = vperm.xlu0 %1020, %v48
    %v1022 = vpop.permute.xlu0 %1021
    %1024 = vset.pattern.permute.xlu0 2
    %1025 = vperm.xlu0 %1024, %v49
    %v1026 = vpop.permute.xlu0 %1025
    %1028 = vset.pattern.permute.xlu0 2
    %1029 = vperm.xlu0 %1028, %v50
    %v1030 = vpop.permute.xlu0 %1029
    %1032 = vset.pattern.permute.xlu0 2
    %1033 = vperm.xlu0 %1032, %v51
    %v1034 = vpop.permute.xlu0 %1033
    %1036 = vset.pattern.permute.xlu0 2
    %1037 = vperm.xlu0 %1036, %v52
    %v1038 = vpop.permute.xlu0 %1037
    %1040 = vset.pattern.permute.xlu0 2
    %1041 = vperm.xlu0 %1040, %v53
    %v1042 = vpop.permute.xlu0 %1041
    %1044 = vset.pattern.permute.xlu0 2
    %1045 = vperm.xlu0 %1044, %v54
    %v1046 = vpop.permute.xlu0 %1045
    %1048 = vset.pattern.permute.xlu0 2
    %1049 = vperm.xlu0 %1048, %v55
    %v1050 = vpop.permute.xlu0 %1049
    %1052 = vset.pattern.permute.xlu0 2
    %1053 = vperm.xlu0 %1052, %v56
    %v1054 = vpop.permute.xlu0 %1053
    %1056 = vset.pattern.permute.xlu0 2
    %1057 = vperm.xlu0 %1056, %v57
    %v1058 = vpop.permute.xlu0 %1057
    %1060 = vset.pattern.permute.xlu0 2
    %1061 = vperm.xlu0 %1060, %v58
    %v1062 = vpop.permute.xlu0 %1061
    %1064 = vset.pattern.permute.xlu0 2
    %1065 = vperm.xlu0 %1064, %v59
    %v1066 = vpop.permute.xlu0 %1065
    %1068 = vset.pattern.permute.xlu0 2
    %1069 = vperm.xlu0 %1068, %v60
    %v1070 = vpop.permute.xlu0 %1069
    %1072 = vset.pattern.permute.xlu0 2
    %1073 = vperm.xlu0 %1072, %v61
    %v1074 = vpop.permute.xlu0 %1073
    %1076 = vset.pattern.permute.xlu0 2
    %1077 = vperm.xlu0 %1076, %v62
    %v1078 = vpop.permute.xlu0 %1077
    %1080 = vset.pattern.permute.xlu0 2
    %1081 = vperm.xlu0 %1080, %v63
    %v1082 = vpop.permute.xlu0 %1081
    %1084 = vset.pattern.permute.xlu0 2
    %1085 = vperm.xlu0 %1084, %v64
    %v1086 = vpop.permute.xlu0 %1085
    %1088 = vset.pattern.permute.xlu0 2
    %1089 = vperm.xlu0 %1088, %v65
    %v1090 = vpop.permute.xlu0 %1089
    %1092 = vset.pattern.permute.xlu0 2
    %1093 = vperm.xlu0 %1092, %v66
    %v1094 = vpop.permute.xlu0 %1093
    %1096 = vset.pattern.permute.xlu0 2
    %1097 = vperm.xlu0 %1096, %v67
    %v1098 = vpop.permute.xlu0 %1097
    %1100 = vset.pattern.permute.xlu0 2
    %1101 = vperm.xlu0 %1100, %v68
    %v1102 = vpop.permute.xlu0 %1101
    %1104 = vset.pattern.permute.xlu0 2
    %1105 = vperm.xlu0 %1104, %v69
    %v1106 = vpop.permute.xlu0 %1105
    %1108 = vset.pattern.permute.xlu0 2
    %1109 = vperm.xlu0 %1108, %v70
    %v1110 = vpop.permute.xlu0 %1109
    %1112 = vset.pattern.permute.xlu0 2
    %1113 = vperm.xlu0 %1112, %v71
    %v1114 = vpop.permute.xlu0 %1113
    %1116 = vset.pattern.permute.xlu0 2
    %1117 = vperm.xlu0 %1116, %v72
    %v1118 = vpop.permute.xlu0 %1117
    %1120 = vset.pattern.permute.xlu0 2
    %1121 = vperm.xlu0 %1120, %v73
    %v1122 = vpop.permute.xlu0 %1121
    %1124 = vset.pattern.permute.xlu0 2
    %1125 = vperm.xlu0 %1124, %v74
    %v1126 = vpop.permute.xlu0 %1125
    %1128 = vset.pattern.permute.xlu0 2
    %1129 = vperm.xlu0 %1128, %v75
    %v1130 = vpop.permute.xlu0 %1129
    %1132 = vset.pattern.permute.xlu0 2
    %1133 = vperm.xlu0 %1132, %v76
    %v1134 = vpop.permute.xlu0 %1133
    %1136 = vset.pattern.permute.xlu0 2
    %1137 = vperm.xlu0 %1136, %v77
    %v1138 = vpop.permute.xlu0 %1137
    %1140 = vset.pattern.permute.xlu0 2
    %1141 = vperm.xlu0 %1140, %v78
    %v1142 = vpop.permute.xlu0 %1141
    %1144 = vset.pattern.permute.xlu0 2
    %1145 = vperm.xlu0 %1144, %v79
    %v1146 = vpop.permute.xlu0 %1145
    %1148 = vset.pattern.permute.xlu0 2
    %1149 = vperm.xlu0 %1148, %v80
    %v1150 = vpop.permute.xlu0 %1149
    %1152 = vset.pattern.permute.xlu0 2
    %1153 = vperm.xlu0 %1152, %v81
    %v1154 = vpop.permute.xlu0 %1153
    %1156 = vset.pattern.permute.xlu0 2
    %1157 = vperm.xlu0 %1156, %v82
    %v1158 = vpop.permute.xlu0 %1157
    %1160 = vset.pattern.permute.xlu0 2
    %1161 = vperm.xlu0 %1160, %v83
    %v1162 = vpop.permute.xlu0 %1161
    %1164 = vset.pattern.permute.xlu0 2
    %1165 = vperm.xlu0 %1164, %v84
    %v1166 = vpop.permute.xlu0 %1165
    %1168 = vset.pattern.permute.xlu0 2
    %1169 = vperm.xlu0 %1168, %v85
    %v1170 = vpop.permute.xlu0 %1169
    %1172 = vset.pattern.permute.xlu0 2
    %1173 = vperm.xlu0 %1172, %v86
    %v1174 = vpop.permute.xlu0 %1173
    %1176 = vset.pattern.permute.xlu0 2
    %1177 = vperm.xlu0 %1176, %v87
    %v1178 = vpop.permute.xlu0 %1177
    %1180 = vset.pattern.permute.xlu0 2
    %1181 = vperm.xlu0 %1180, %v88
    %v1182 = vpop.permute.xlu0 %1181
    %1184 = vset.pattern.permute.xlu0 2
    %1185 = vperm.xlu0 %1184, %v89
    %v1186 = vpop.permute.xlu0 %1185
    %1188 = vset.pattern.permute.xlu0 2
    %1189 = vperm.xlu0 %1188, %v90
    %v1190 = vpop.permute.xlu0 %1189
    %1192 = vset.pattern.permute.xlu0 2
    %1193 = vperm.xlu0 %1192, %v91
    %v1194 = vpop.permute.xlu0 %1193
    %v1196 = vlaneseq
    %v1197 = vshrl.u32 %v1196, 7
    %v1198 = vsub.s32 2, %v1197
    %v1199 = vrot.slane %v92, %v1198
    %v1200 = vmul.f32 %v942, %v1199
    %v1201 = vmul.f32 %v946, %v1199
    %v1202 = vmul.f32 %v950, %v1199
    %v1203 = vmul.f32 %v954, %v1199
    %v1204 = vmul.f32 %v958, %v1199
    %v1205 = vmul.f32 %v962, %v1199
    %v1206 = vmul.f32 %v966, %v1199
    %v1207 = vmul.f32 %v970, %v1199
    %v1208 = vmul.f32 %v974, %v1199
    %v1209 = vmul.f32 %v978, %v1199
    %v1210 = vmul.f32 %v982, %v1199
    %v1211 = vmul.f32 %v986, %v1199
    %v1212 = vmul.f32 %v990, %v1199
    %v1213 = vmul.f32 %v994, %v1199
    %v1214 = vmul.f32 %v998, %v1199
    %v1215 = vmul.f32 %v1002, %v1199
    %v1216 = vmul.f32 %v1006, %v1199
    %v1217 = vmul.f32 %v1010, %v1199
    %v1218 = vmul.f32 %v1014, %v1199
    %v1219 = vmul.f32 %v1018, %v1199
    %v1220 = vmul.f32 %v1022, %v1199
    %v1221 = vmul.f32 %v1026, %v1199
    %v1222 = vmul.f32 %v1030, %v1199
    %v1223 = vmul.f32 %v1034, %v1199
    %v1224 = vmul.f32 %v1038, %v1199
    %v1225 = vmul.f32 %v1042, %v1199
    %v1226 = vmul.f32 %v1046, %v1199
    %v1227 = vmul.f32 %v1050, %v1199
    %v1228 = vmul.f32 %v1054, %v1199
    %v1229 = vmul.f32 %v1058, %v1199
    %v1230 = vmul.f32 %v1062, %v1199
    %v1231 = vmul.f32 %v1066, %v1199
    %v1232 = vmul.f32 %v1070, %v1199
    %v1233 = vmul.f32 %v1074, %v1199
    %v1234 = vmul.f32 %v1078, %v1199
    %v1235 = vmul.f32 %v1082, %v1199
    %v1236 = vmul.f32 %v1086, %v1199
    %v1237 = vmul.f32 %v1090, %v1199
    %v1238 = vmul.f32 %v1094, %v1199
    %v1239 = vmul.f32 %v1098, %v1199
    %v1240 = vmul.f32 %v1102, %v1199
    %v1241 = vmul.f32 %v1106, %v1199
    %v1242 = vmul.f32 %v1110, %v1199
    %v1243 = vmul.f32 %v1114, %v1199
    %v1244 = vmul.f32 %v1118, %v1199
    %v1245 = vmul.f32 %v1122, %v1199
    %v1246 = vmul.f32 %v1126, %v1199
    %v1247 = vmul.f32 %v1130, %v1199
    %v1248 = vmul.f32 %v1134, %v1199
    %v1249 = vmul.f32 %v1138, %v1199
    %v1250 = vmul.f32 %v1142, %v1199
    %v1251 = vmul.f32 %v1146, %v1199
    %v1252 = vmul.f32 %v1150, %v1199
    %v1253 = vmul.f32 %v1154, %v1199
    %v1254 = vmul.f32 %v1158, %v1199
    %v1255 = vmul.f32 %v1162, %v1199
    %v1256 = vmul.f32 %v1166, %v1199
    %v1257 = vmul.f32 %v1170, %v1199
    %v1258 = vmul.f32 %v1174, %v1199
    %v1259 = vmul.f32 %v1178, %v1199
    %v1260 = vmul.f32 %v1182, %v1199
    %v1261 = vmul.f32 %v1186, %v1199
    %v1262 = vmul.f32 %v1190, %v1199
    %v1263 = vmul.f32 %v1194, %v1199
    %v1264 = vadd.f32 %v876, %v1200
    %v1265 = vadd.f32 %v877, %v1201
    %v1266 = vadd.f32 %v878, %v1202
    %v1267 = vadd.f32 %v879, %v1203
    %v1268 = vadd.f32 %v880, %v1204
    %v1269 = vadd.f32 %v881, %v1205
    %v1270 = vadd.f32 %v882, %v1206
    %v1271 = vadd.f32 %v883, %v1207
    %v1272 = vadd.f32 %v884, %v1208
    %v1273 = vadd.f32 %v885, %v1209
    %v1274 = vadd.f32 %v886, %v1210
    %v1275 = vadd.f32 %v887, %v1211
    %v1276 = vadd.f32 %v888, %v1212
    %v1277 = vadd.f32 %v889, %v1213
    %v1278 = vadd.f32 %v890, %v1214
    %v1279 = vadd.f32 %v891, %v1215
    %v1280 = vadd.f32 %v892, %v1216
    %v1281 = vadd.f32 %v893, %v1217
    %v1282 = vadd.f32 %v894, %v1218
    %v1283 = vadd.f32 %v895, %v1219
    %v1284 = vadd.f32 %v896, %v1220
    %v1285 = vadd.f32 %v897, %v1221
    %v1286 = vadd.f32 %v898, %v1222
    %v1287 = vadd.f32 %v899, %v1223
    %v1288 = vadd.f32 %v900, %v1224
    %v1289 = vadd.f32 %v901, %v1225
    %v1290 = vadd.f32 %v902, %v1226
    %v1291 = vadd.f32 %v903, %v1227
    %v1292 = vadd.f32 %v904, %v1228
    %v1293 = vadd.f32 %v905, %v1229
    %v1294 = vadd.f32 %v906, %v1230
    %v1295 = vadd.f32 %v907, %v1231
    %v1296 = vadd.f32 %v908, %v1232
    %v1297 = vadd.f32 %v909, %v1233
    %v1298 = vadd.f32 %v910, %v1234
    %v1299 = vadd.f32 %v911, %v1235
    %v1300 = vadd.f32 %v912, %v1236
    %v1301 = vadd.f32 %v913, %v1237
    %v1302 = vadd.f32 %v914, %v1238
    %v1303 = vadd.f32 %v915, %v1239
    %v1304 = vadd.f32 %v916, %v1240
    %v1305 = vadd.f32 %v917, %v1241
    %v1306 = vadd.f32 %v918, %v1242
    %v1307 = vadd.f32 %v919, %v1243
    %v1308 = vadd.f32 %v920, %v1244
    %v1309 = vadd.f32 %v921, %v1245
    %v1310 = vadd.f32 %v922, %v1246
    %v1311 = vadd.f32 %v923, %v1247
    %v1312 = vadd.f32 %v924, %v1248
    %v1313 = vadd.f32 %v925, %v1249
    %v1314 = vadd.f32 %v926, %v1250
    %v1315 = vadd.f32 %v927, %v1251
    %v1316 = vadd.f32 %v928, %v1252
    %v1317 = vadd.f32 %v929, %v1253
    %v1318 = vadd.f32 %v930, %v1254
    %v1319 = vadd.f32 %v931, %v1255
    %v1320 = vadd.f32 %v932, %v1256
    %v1321 = vadd.f32 %v933, %v1257
    %v1322 = vadd.f32 %v934, %v1258
    %v1323 = vadd.f32 %v935, %v1259
    %v1324 = vadd.f32 %v936, %v1260
    %v1325 = vadd.f32 %v937, %v1261
    %v1326 = vadd.f32 %v938, %v1262
    %v1327 = vadd.f32 %v939, %v1263
    %1328 = vset.pattern.permute.xlu0 3
    %1329 = vperm.xlu0 %1328, %v28
    %v1330 = vpop.permute.xlu0 %1329
    %1332 = vset.pattern.permute.xlu0 3
    %1333 = vperm.xlu0 %1332, %v29
    %v1334 = vpop.permute.xlu0 %1333
    %1336 = vset.pattern.permute.xlu0 3
    %1337 = vperm.xlu0 %1336, %v30
    %v1338 = vpop.permute.xlu0 %1337
    %1340 = vset.pattern.permute.xlu0 3
    %1341 = vperm.xlu0 %1340, %v31
    %v1342 = vpop.permute.xlu0 %1341
    %1344 = vset.pattern.permute.xlu0 3
    %1345 = vperm.xlu0 %1344, %v32
    %v1346 = vpop.permute.xlu0 %1345
    %1348 = vset.pattern.permute.xlu0 3
    %1349 = vperm.xlu0 %1348, %v33
    %v1350 = vpop.permute.xlu0 %1349
    %1352 = vset.pattern.permute.xlu0 3
    %1353 = vperm.xlu0 %1352, %v34
    %v1354 = vpop.permute.xlu0 %1353
    %1356 = vset.pattern.permute.xlu0 3
    %1357 = vperm.xlu0 %1356, %v35
    %v1358 = vpop.permute.xlu0 %1357
    %1360 = vset.pattern.permute.xlu0 3
    %1361 = vperm.xlu0 %1360, %v36
    %v1362 = vpop.permute.xlu0 %1361
    %1364 = vset.pattern.permute.xlu0 3
    %1365 = vperm.xlu0 %1364, %v37
    %v1366 = vpop.permute.xlu0 %1365
    %1368 = vset.pattern.permute.xlu0 3
    %1369 = vperm.xlu0 %1368, %v38
    %v1370 = vpop.permute.xlu0 %1369
    %1372 = vset.pattern.permute.xlu0 3
    %1373 = vperm.xlu0 %1372, %v39
    %v1374 = vpop.permute.xlu0 %1373
    %1376 = vset.pattern.permute.xlu0 3
    %1377 = vperm.xlu0 %1376, %v40
    %v1378 = vpop.permute.xlu0 %1377
    %1380 = vset.pattern.permute.xlu0 3
    %1381 = vperm.xlu0 %1380, %v41
    %v1382 = vpop.permute.xlu0 %1381
    %1384 = vset.pattern.permute.xlu0 3
    %1385 = vperm.xlu0 %1384, %v42
    %v1386 = vpop.permute.xlu0 %1385
    %1388 = vset.pattern.permute.xlu0 3
    %1389 = vperm.xlu0 %1388, %v43
    %v1390 = vpop.permute.xlu0 %1389
    %1392 = vset.pattern.permute.xlu0 3
    %1393 = vperm.xlu0 %1392, %v44
    %v1394 = vpop.permute.xlu0 %1393
    %1396 = vset.pattern.permute.xlu0 3
    %1397 = vperm.xlu0 %1396, %v45
    %v1398 = vpop.permute.xlu0 %1397
    %1400 = vset.pattern.permute.xlu0 3
    %1401 = vperm.xlu0 %1400, %v46
    %v1402 = vpop.permute.xlu0 %1401
    %1404 = vset.pattern.permute.xlu0 3
    %1405 = vperm.xlu0 %1404, %v47
    %v1406 = vpop.permute.xlu0 %1405
    %1408 = vset.pattern.permute.xlu0 3
    %1409 = vperm.xlu0 %1408, %v48
    %v1410 = vpop.permute.xlu0 %1409
    %1412 = vset.pattern.permute.xlu0 3
    %1413 = vperm.xlu0 %1412, %v49
    %v1414 = vpop.permute.xlu0 %1413
    %1416 = vset.pattern.permute.xlu0 3
    %1417 = vperm.xlu0 %1416, %v50
    %v1418 = vpop.permute.xlu0 %1417
    %1420 = vset.pattern.permute.xlu0 3
    %1421 = vperm.xlu0 %1420, %v51
    %v1422 = vpop.permute.xlu0 %1421
    %1424 = vset.pattern.permute.xlu0 3
    %1425 = vperm.xlu0 %1424, %v52
    %v1426 = vpop.permute.xlu0 %1425
    %1428 = vset.pattern.permute.xlu0 3
    %1429 = vperm.xlu0 %1428, %v53
    %v1430 = vpop.permute.xlu0 %1429
    %1432 = vset.pattern.permute.xlu0 3
    %1433 = vperm.xlu0 %1432, %v54
    %v1434 = vpop.permute.xlu0 %1433
    %1436 = vset.pattern.permute.xlu0 3
    %1437 = vperm.xlu0 %1436, %v55
    %v1438 = vpop.permute.xlu0 %1437
    %1440 = vset.pattern.permute.xlu0 3
    %1441 = vperm.xlu0 %1440, %v56
    %v1442 = vpop.permute.xlu0 %1441
    %1444 = vset.pattern.permute.xlu0 3
    %1445 = vperm.xlu0 %1444, %v57
    %v1446 = vpop.permute.xlu0 %1445
    %1448 = vset.pattern.permute.xlu0 3
    %1449 = vperm.xlu0 %1448, %v58
    %v1450 = vpop.permute.xlu0 %1449
    %1452 = vset.pattern.permute.xlu0 3
    %1453 = vperm.xlu0 %1452, %v59
    %v1454 = vpop.permute.xlu0 %1453
    %1456 = vset.pattern.permute.xlu0 3
    %1457 = vperm.xlu0 %1456, %v60
    %v1458 = vpop.permute.xlu0 %1457
    %1460 = vset.pattern.permute.xlu0 3
    %1461 = vperm.xlu0 %1460, %v61
    %v1462 = vpop.permute.xlu0 %1461
    %1464 = vset.pattern.permute.xlu0 3
    %1465 = vperm.xlu0 %1464, %v62
    %v1466 = vpop.permute.xlu0 %1465
    %1468 = vset.pattern.permute.xlu0 3
    %1469 = vperm.xlu0 %1468, %v63
    %v1470 = vpop.permute.xlu0 %1469
    %1472 = vset.pattern.permute.xlu0 3
    %1473 = vperm.xlu0 %1472, %v64
    %v1474 = vpop.permute.xlu0 %1473
    %1476 = vset.pattern.permute.xlu0 3
    %1477 = vperm.xlu0 %1476, %v65
    %v1478 = vpop.permute.xlu0 %1477
    %1480 = vset.pattern.permute.xlu0 3
    %1481 = vperm.xlu0 %1480, %v66
    %v1482 = vpop.permute.xlu0 %1481
    %1484 = vset.pattern.permute.xlu0 3
    %1485 = vperm.xlu0 %1484, %v67
    %v1486 = vpop.permute.xlu0 %1485
    %1488 = vset.pattern.permute.xlu0 3
    %1489 = vperm.xlu0 %1488, %v68
    %v1490 = vpop.permute.xlu0 %1489
    %1492 = vset.pattern.permute.xlu0 3
    %1493 = vperm.xlu0 %1492, %v69
    %v1494 = vpop.permute.xlu0 %1493
    %1496 = vset.pattern.permute.xlu0 3
    %1497 = vperm.xlu0 %1496, %v70
    %v1498 = vpop.permute.xlu0 %1497
    %1500 = vset.pattern.permute.xlu0 3
    %1501 = vperm.xlu0 %1500, %v71
    %v1502 = vpop.permute.xlu0 %1501
    %1504 = vset.pattern.permute.xlu0 3
    %1505 = vperm.xlu0 %1504, %v72
    %v1506 = vpop.permute.xlu0 %1505
    %1508 = vset.pattern.permute.xlu0 3
    %1509 = vperm.xlu0 %1508, %v73
    %v1510 = vpop.permute.xlu0 %1509
    %1512 = vset.pattern.permute.xlu0 3
    %1513 = vperm.xlu0 %1512, %v74
    %v1514 = vpop.permute.xlu0 %1513
    %1516 = vset.pattern.permute.xlu0 3
    %1517 = vperm.xlu0 %1516, %v75
    %v1518 = vpop.permute.xlu0 %1517
    %1520 = vset.pattern.permute.xlu0 3
    %1521 = vperm.xlu0 %1520, %v76
    %v1522 = vpop.permute.xlu0 %1521
    %1524 = vset.pattern.permute.xlu0 3
    %1525 = vperm.xlu0 %1524, %v77
    %v1526 = vpop.permute.xlu0 %1525
    %1528 = vset.pattern.permute.xlu0 3
    %1529 = vperm.xlu0 %1528, %v78
    %v1530 = vpop.permute.xlu0 %1529
    %1532 = vset.pattern.permute.xlu0 3
    %1533 = vperm.xlu0 %1532, %v79
    %v1534 = vpop.permute.xlu0 %1533
    %1536 = vset.pattern.permute.xlu0 3
    %1537 = vperm.xlu0 %1536, %v80
    %v1538 = vpop.permute.xlu0 %1537
    %1540 = vset.pattern.permute.xlu0 3
    %1541 = vperm.xlu0 %1540, %v81
    %v1542 = vpop.permute.xlu0 %1541
    %1544 = vset.pattern.permute.xlu0 3
    %1545 = vperm.xlu0 %1544, %v82
    %v1546 = vpop.permute.xlu0 %1545
    %1548 = vset.pattern.permute.xlu0 3
    %1549 = vperm.xlu0 %1548, %v83
    %v1550 = vpop.permute.xlu0 %1549
    %1552 = vset.pattern.permute.xlu0 3
    %1553 = vperm.xlu0 %1552, %v84
    %v1554 = vpop.permute.xlu0 %1553
    %1556 = vset.pattern.permute.xlu0 3
    %1557 = vperm.xlu0 %1556, %v85
    %v1558 = vpop.permute.xlu0 %1557
    %1560 = vset.pattern.permute.xlu0 3
    %1561 = vperm.xlu0 %1560, %v86
    %v1562 = vpop.permute.xlu0 %1561
    %1564 = vset.pattern.permute.xlu0 3
    %1565 = vperm.xlu0 %1564, %v87
    %v1566 = vpop.permute.xlu0 %1565
    %1568 = vset.pattern.permute.xlu0 3
    %1569 = vperm.xlu0 %1568, %v88
    %v1570 = vpop.permute.xlu0 %1569
    %1572 = vset.pattern.permute.xlu0 3
    %1573 = vperm.xlu0 %1572, %v89
    %v1574 = vpop.permute.xlu0 %1573
    %1576 = vset.pattern.permute.xlu0 3
    %1577 = vperm.xlu0 %1576, %v90
    %v1578 = vpop.permute.xlu0 %1577
    %1580 = vset.pattern.permute.xlu0 3
    %1581 = vperm.xlu0 %1580, %v91
    %v1582 = vpop.permute.xlu0 %1581
    %v1584 = vlaneseq
    %v1585 = vshrl.u32 %v1584, 7
    %v1586 = vsub.s32 3, %v1585
    %v1587 = vrot.slane %v92, %v1586
    %v1588 = vmul.f32 %v1330, %v1587
    %v1589 = vmul.f32 %v1334, %v1587
    %v1590 = vmul.f32 %v1338, %v1587
    %v1591 = vmul.f32 %v1342, %v1587
    %v1592 = vmul.f32 %v1346, %v1587
    %v1593 = vmul.f32 %v1350, %v1587
    %v1594 = vmul.f32 %v1354, %v1587
    %v1595 = vmul.f32 %v1358, %v1587
    %v1596 = vmul.f32 %v1362, %v1587
    %v1597 = vmul.f32 %v1366, %v1587
    %v1598 = vmul.f32 %v1370, %v1587
    %v1599 = vmul.f32 %v1374, %v1587
    %v1600 = vmul.f32 %v1378, %v1587
    %v1601 = vmul.f32 %v1382, %v1587
    %v1602 = vmul.f32 %v1386, %v1587
    %v1603 = vmul.f32 %v1390, %v1587
    %v1604 = vmul.f32 %v1394, %v1587
    %v1605 = vmul.f32 %v1398, %v1587
    %v1606 = vmul.f32 %v1402, %v1587
    %v1607 = vmul.f32 %v1406, %v1587
    %v1608 = vmul.f32 %v1410, %v1587
    %v1609 = vmul.f32 %v1414, %v1587
    %v1610 = vmul.f32 %v1418, %v1587
    %v1611 = vmul.f32 %v1422, %v1587
    %v1612 = vmul.f32 %v1426, %v1587
    %v1613 = vmul.f32 %v1430, %v1587
    %v1614 = vmul.f32 %v1434, %v1587
    %v1615 = vmul.f32 %v1438, %v1587
    %v1616 = vmul.f32 %v1442, %v1587
    %v1617 = vmul.f32 %v1446, %v1587
    %v1618 = vmul.f32 %v1450, %v1587
    %v1619 = vmul.f32 %v1454, %v1587
    %v1620 = vmul.f32 %v1458, %v1587
    %v1621 = vmul.f32 %v1462, %v1587
    %v1622 = vmul.f32 %v1466, %v1587
    %v1623 = vmul.f32 %v1470, %v1587
    %v1624 = vmul.f32 %v1474, %v1587
    %v1625 = vmul.f32 %v1478, %v1587
    %v1626 = vmul.f32 %v1482, %v1587
    %v1627 = vmul.f32 %v1486, %v1587
    %v1628 = vmul.f32 %v1490, %v1587
    %v1629 = vmul.f32 %v1494, %v1587
    %v1630 = vmul.f32 %v1498, %v1587
    %v1631 = vmul.f32 %v1502, %v1587
    %v1632 = vmul.f32 %v1506, %v1587
    %v1633 = vmul.f32 %v1510, %v1587
    %v1634 = vmul.f32 %v1514, %v1587
    %v1635 = vmul.f32 %v1518, %v1587
    %v1636 = vmul.f32 %v1522, %v1587
    %v1637 = vmul.f32 %v1526, %v1587
    %v1638 = vmul.f32 %v1530, %v1587
    %v1639 = vmul.f32 %v1534, %v1587
    %v1640 = vmul.f32 %v1538, %v1587
    %v1641 = vmul.f32 %v1542, %v1587
    %v1642 = vmul.f32 %v1546, %v1587
    %v1643 = vmul.f32 %v1550, %v1587
    %v1644 = vmul.f32 %v1554, %v1587
    %v1645 = vmul.f32 %v1558, %v1587
    %v1646 = vmul.f32 %v1562, %v1587
    %v1647 = vmul.f32 %v1566, %v1587
    %v1648 = vmul.f32 %v1570, %v1587
    %v1649 = vmul.f32 %v1574, %v1587
    %v1650 = vmul.f32 %v1578, %v1587
    %v1651 = vmul.f32 %v1582, %v1587
    %v1652 = vadd.f32 %v1264, %v1588
    %v1653 = vadd.f32 %v1265, %v1589
    %v1654 = vadd.f32 %v1266, %v1590
    %v1655 = vadd.f32 %v1267, %v1591
    %v1656 = vadd.f32 %v1268, %v1592
    %v1657 = vadd.f32 %v1269, %v1593
    %v1658 = vadd.f32 %v1270, %v1594
    %v1659 = vadd.f32 %v1271, %v1595
    %v1660 = vadd.f32 %v1272, %v1596
    %v1661 = vadd.f32 %v1273, %v1597
    %v1662 = vadd.f32 %v1274, %v1598
    %v1663 = vadd.f32 %v1275, %v1599
    %v1664 = vadd.f32 %v1276, %v1600
    %v1665 = vadd.f32 %v1277, %v1601
    %v1666 = vadd.f32 %v1278, %v1602
    %v1667 = vadd.f32 %v1279, %v1603
    %v1668 = vadd.f32 %v1280, %v1604
    %v1669 = vadd.f32 %v1281, %v1605
    %v1670 = vadd.f32 %v1282, %v1606
    %v1671 = vadd.f32 %v1283, %v1607
    %v1672 = vadd.f32 %v1284, %v1608
    %v1673 = vadd.f32 %v1285, %v1609
    %v1674 = vadd.f32 %v1286, %v1610
    %v1675 = vadd.f32 %v1287, %v1611
    %v1676 = vadd.f32 %v1288, %v1612
    %v1677 = vadd.f32 %v1289, %v1613
    %v1678 = vadd.f32 %v1290, %v1614
    %v1679 = vadd.f32 %v1291, %v1615
    %v1680 = vadd.f32 %v1292, %v1616
    %v1681 = vadd.f32 %v1293, %v1617
    %v1682 = vadd.f32 %v1294, %v1618
    %v1683 = vadd.f32 %v1295, %v1619
    %v1684 = vadd.f32 %v1296, %v1620
    %v1685 = vadd.f32 %v1297, %v1621
    %v1686 = vadd.f32 %v1298, %v1622
    %v1687 = vadd.f32 %v1299, %v1623
    %v1688 = vadd.f32 %v1300, %v1624
    %v1689 = vadd.f32 %v1301, %v1625
    %v1690 = vadd.f32 %v1302, %v1626
    %v1691 = vadd.f32 %v1303, %v1627
    %v1692 = vadd.f32 %v1304, %v1628
    %v1693 = vadd.f32 %v1305, %v1629
    %v1694 = vadd.f32 %v1306, %v1630
    %v1695 = vadd.f32 %v1307, %v1631
    %v1696 = vadd.f32 %v1308, %v1632
    %v1697 = vadd.f32 %v1309, %v1633
    %v1698 = vadd.f32 %v1310, %v1634
    %v1699 = vadd.f32 %v1311, %v1635
    %v1700 = vadd.f32 %v1312, %v1636
    %v1701 = vadd.f32 %v1313, %v1637
    %v1702 = vadd.f32 %v1314, %v1638
    %v1703 = vadd.f32 %v1315, %v1639
    %v1704 = vadd.f32 %v1316, %v1640
    %v1705 = vadd.f32 %v1317, %v1641
    %v1706 = vadd.f32 %v1318, %v1642
    %v1707 = vadd.f32 %v1319, %v1643
    %v1708 = vadd.f32 %v1320, %v1644
    %v1709 = vadd.f32 %v1321, %v1645
    %v1710 = vadd.f32 %v1322, %v1646
    %v1711 = vadd.f32 %v1323, %v1647
    %v1712 = vadd.f32 %v1324, %v1648
    %v1713 = vadd.f32 %v1325, %v1649
    %v1714 = vadd.f32 %v1326, %v1650
    %v1715 = vadd.f32 %v1327, %v1651
    %v1716 = vmax.f32 %v1652, 0.0
    %v1717 = vmax.f32 %v1653, 0.0
    %v1718 = vmax.f32 %v1654, 0.0
    %v1719 = vmax.f32 %v1655, 0.0
    %v1720 = vmax.f32 %v1656, 0.0
    %v1721 = vmax.f32 %v1657, 0.0
    %v1722 = vmax.f32 %v1658, 0.0
    %v1723 = vmax.f32 %v1659, 0.0
    %v1724 = vmax.f32 %v1660, 0.0
    %v1725 = vmax.f32 %v1661, 0.0
    %v1726 = vmax.f32 %v1662, 0.0
    %v1727 = vmax.f32 %v1663, 0.0
    %v1728 = vmax.f32 %v1664, 0.0
    %v1729 = vmax.f32 %v1665, 0.0
    %v1730 = vmax.f32 %v1666, 0.0
    %v1731 = vmax.f32 %v1667, 0.0
    %v1732 = vmax.f32 %v1668, 0.0
    %v1733 = vmax.f32 %v1669, 0.0
    %v1734 = vmax.f32 %v1670, 0.0
    %v1735 = vmax.f32 %v1671, 0.0
    %v1736 = vmax.f32 %v1672, 0.0
    %v1737 = vmax.f32 %v1673, 0.0
    %v1738 = vmax.f32 %v1674, 0.0
    %v1739 = vmax.f32 %v1675, 0.0
    %v1740 = vmax.f32 %v1676, 0.0
    %v1741 = vmax.f32 %v1677, 0.0
    %v1742 = vmax.f32 %v1678, 0.0
    %v1743 = vmax.f32 %v1679, 0.0
    %v1744 = vmax.f32 %v1680, 0.0
    %v1745 = vmax.f32 %v1681, 0.0
    %v1746 = vmax.f32 %v1682, 0.0
    %v1747 = vmax.f32 %v1683, 0.0
    %v1748 = vmax.f32 %v1684, 0.0
    %v1749 = vmax.f32 %v1685, 0.0
    %v1750 = vmax.f32 %v1686, 0.0
    %v1751 = vmax.f32 %v1687, 0.0
    %v1752 = vmax.f32 %v1688, 0.0
    %v1753 = vmax.f32 %v1689, 0.0
    %v1754 = vmax.f32 %v1690, 0.0
    %v1755 = vmax.f32 %v1691, 0.0
    %v1756 = vmax.f32 %v1692, 0.0
    %v1757 = vmax.f32 %v1693, 0.0
    %v1758 = vmax.f32 %v1694, 0.0
    %v1759 = vmax.f32 %v1695, 0.0
    %v1760 = vmax.f32 %v1696, 0.0
    %v1761 = vmax.f32 %v1697, 0.0
    %v1762 = vmax.f32 %v1698, 0.0
    %v1763 = vmax.f32 %v1699, 0.0
    %v1764 = vmax.f32 %v1700, 0.0
    %v1765 = vmax.f32 %v1701, 0.0
    %v1766 = vmax.f32 %v1702, 0.0
    %v1767 = vmax.f32 %v1703, 0.0
    %v1768 = vmax.f32 %v1704, 0.0
    %v1769 = vmax.f32 %v1705, 0.0
    %v1770 = vmax.f32 %v1706, 0.0
    %v1771 = vmax.f32 %v1707, 0.0
    %v1772 = vmax.f32 %v1708, 0.0
    %v1773 = vmax.f32 %v1709, 0.0
    %v1774 = vmax.f32 %v1710, 0.0
    %v1775 = vmax.f32 %v1711, 0.0
    %v1776 = vmax.f32 %v1712, 0.0
    %v1777 = vmax.f32 %v1713, 0.0
    %v1778 = vmax.f32 %v1714, 0.0
    %v1779 = vmax.f32 %v1715, 0.0
    %v1780 = vpack.c.bf16 %v1717, %v1716
    %v1781 = vpack.c.bf16 %v1719, %v1718
    %v1782 = vpack.c.bf16 %v1721, %v1720
    %v1783 = vpack.c.bf16 %v1723, %v1722
    %v1784 = vpack.c.bf16 %v1725, %v1724
    %v1785 = vpack.c.bf16 %v1727, %v1726
    %v1786 = vpack.c.bf16 %v1729, %v1728
    %v1787 = vpack.c.bf16 %v1731, %v1730
    %v1788 = vpack.c.bf16 %v1733, %v1732
    %v1789 = vpack.c.bf16 %v1735, %v1734
    %v1790 = vpack.c.bf16 %v1737, %v1736
    %v1791 = vpack.c.bf16 %v1739, %v1738
    %v1792 = vpack.c.bf16 %v1741, %v1740
    %v1793 = vpack.c.bf16 %v1743, %v1742
    %v1794 = vpack.c.bf16 %v1745, %v1744
    %v1795 = vpack.c.bf16 %v1747, %v1746
    %v1796 = vpack.c.bf16 %v1749, %v1748
    %v1797 = vpack.c.bf16 %v1751, %v1750
    %v1798 = vpack.c.bf16 %v1753, %v1752
    %v1799 = vpack.c.bf16 %v1755, %v1754
    %v1800 = vpack.c.bf16 %v1757, %v1756
    %v1801 = vpack.c.bf16 %v1759, %v1758
    %v1802 = vpack.c.bf16 %v1761, %v1760
    %v1803 = vpack.c.bf16 %v1763, %v1762
    %v1804 = vpack.c.bf16 %v1765, %v1764
    %v1805 = vpack.c.bf16 %v1767, %v1766
    %v1806 = vpack.c.bf16 %v1769, %v1768
    %v1807 = vpack.c.bf16 %v1771, %v1770
    %v1808 = vpack.c.bf16 %v1773, %v1772
    %v1809 = vpack.c.bf16 %v1775, %v1774
    %v1810 = vpack.c.bf16 %v1777, %v1776
    %v1811 = vpack.c.bf16 %v1779, %v1778
    %v1812 = vld [vmem:[%s3] sm:$0xf]
    %v1813 = vld [vmem:[%s3 + $0x4] sm:$0xf]
    %v1814 = vld [vmem:[%s3 + $0x8] sm:$0xf]
    %v1815 = vld [vmem:[%s3 + $0xc] sm:$0xf]
    %v1816 = vld [vmem:[%s3 + $0x10] sm:$0xf]
    %v1817 = vld [vmem:[%s3 + $0x14] sm:$0xf]
    %v1818 = vld [vmem:[%s3 + $0x18] sm:$0xf]
    %v1819 = vld [vmem:[%s3 + $0x1c] sm:$0xf]
    %v1820 = vld [vmem:[%s3 + $0x20] sm:$0xf]
    %v1821 = vld [vmem:[%s3 + $0x24] sm:$0xf]
    %v1822 = vld [vmem:[%s3 + $0x28] sm:$0xf]
    %v1823 = vld [vmem:[%s3 + $0x2c] sm:$0xf]
    %v1824 = vld [vmem:[%s3 + $0x30] sm:$0xf]
    %v1825 = vld [vmem:[%s3 + $0x34] sm:$0xf]
    %v1826 = vld [vmem:[%s3 + $0x38] sm:$0xf]
    %v1827 = vld [vmem:[%s3 + $0x3c] sm:$0xf]
    %v1828 = vld [vmem:[%s4] sm:$0x1]
    %v1830 = vlaneseq
    %v1831 = vshrl.u32 %v1830, 7
    %v1832 = vsub.s32 0, %v1831
    %v1833 = vrot.slane %v1828, %v1832
    %v1851 = vunpack.c.l.b16 %v1812
    %v1852 = vunpack.c.l.b16 %v1813
    %v1853 = vunpack.c.l.b16 %v1814
    %v1854 = vunpack.c.l.b16 %v1815
    %v1855 = vunpack.c.l.b16 %v1816
    %v1856 = vunpack.c.l.b16 %v1817
    %v1857 = vunpack.c.l.b16 %v1818
    %v1858 = vunpack.c.l.b16 %v1819
    %v1859 = vunpack.c.l.b16 %v1820
    %v1860 = vunpack.c.l.b16 %v1821
    %v1861 = vunpack.c.l.b16 %v1822
    %v1862 = vunpack.c.l.b16 %v1823
    %v1863 = vunpack.c.l.b16 %v1824
    %v1864 = vunpack.c.l.b16 %v1825
    %v1865 = vunpack.c.l.b16 %v1826
    %v1866 = vunpack.c.l.b16 %v1827
    %v1867 = vpack.c.b16 %v1852, %v1851
    %v1868 = vpack.c.b16 %v1854, %v1853
    %v1869 = vpack.c.b16 %v1856, %v1855
    %v1870 = vpack.c.b16 %v1858, %v1857
    %v1871 = vpack.c.b16 %v1860, %v1859
    %v1872 = vpack.c.b16 %v1862, %v1861
    %v1873 = vpack.c.b16 %v1864, %v1863
    %v1874 = vpack.c.b16 %v1866, %v1865
    %1883 = vmatprep.subr.bf16.mxu0 0
    %1884 = vmatpush1.bf16.msra.mxu0 %v1867
    %1885 = vmatprep.subr.bf16.mxu0 0
    %1886 = vmatpush1.bf16.msra.mxu0 %v1868
    %1887 = vmatprep.subr.bf16.mxu0 0
    %1888 = vmatpush1.bf16.msra.mxu0 %v1869
    %1889 = vmatprep.subr.bf16.mxu0 0
    %1890 = vmatpush1.bf16.msra.mxu0 %v1870
    %1891 = vmatprep.subr.bf16.mxu0 0
    %1892 = vmatpush1.bf16.msra.mxu0 %v1871
    %1893 = vmatprep.subr.bf16.mxu0 0
    %1894 = vmatpush1.bf16.msra.mxu0 %v1872
    %1895 = vmatprep.subr.bf16.mxu0 0
    %1896 = vmatpush1.bf16.msra.mxu0 %v1873
    %1897 = vmatprep.subr.bf16.mxu0 0
    %1898 = vmatpush1.bf16.msra.mxu0 %v1874
    %1899 = vmatprep.subr.bf16.mxu0 0
    %1900 = vmatpush1.bf16.msra.mxu0 0
    %1901 = vmatprep.subr.bf16.mxu0 0
    %1902 = vmatpush1.bf16.msra.mxu0 0
    %1903 = vmatprep.subr.bf16.mxu0 0
    %1904 = vmatpush1.bf16.msra.mxu0 0
    %1905 = vmatprep.subr.bf16.mxu0 0
    %1906 = vmatpush1.bf16.msra.mxu0 0
    %1907 = vmatprep.subr.bf16.mxu0 0
    %1908 = vmatpush1.bf16.msra.mxu0 0
    %1909 = vmatprep.subr.bf16.mxu0 0
    %1910 = vmatpush1.bf16.msra.mxu0 0
    %1911 = vmatprep.subr.bf16.mxu0 0
    %1912 = vmatpush1.bf16.msra.mxu0 0
    %1913 = vmatprep.subr.bf16.mxu0 0
    %1914 = vmatpush1.bf16.msra.mxu0 0
    %1915 = vmatprep.mubr.bf16.mxu0 0
    %1916 = vmatmul.mubr.bf16.gmra.mrb[0].mxu0 %v1780
    %v1917 = vpop.f32.mrb[0].mxu0
    %v1918 = vadd.f32 %v1833, %v1917
    %v1919 = vpop.f32.mrb[0].mxu0
    %v1920 = vpop.f32.mrb[0].mxu0
    %v1921 = vadd.f32 %v1833, %v1920
    %v1922 = vpop.f32.mrb[0].mxu0
    %1923 = vmatprep.mubr.bf16.mxu0 0
    %1924 = vmatmul.mubr.bf16.gmra.mrb[0].mxu0 %v1781
    %v1925 = vpop.f32.mrb[0].mxu0
    %v1926 = vadd.f32 %v1833, %v1925
    %v1927 = vpop.f32.mrb[0].mxu0
    %v1928 = vpop.f32.mrb[0].mxu0
    %v1929 = vadd.f32 %v1833, %v1928
    %v1930 = vpop.f32.mrb[0].mxu0
    %1931 = vmatprep.mubr.bf16.mxu0 0
    %1932 = vmatmul.mubr.bf16.gmra.mrb[0].mxu0 %v1782
    %v1933 = vpop.f32.mrb[0].mxu0
    %v1934 = vadd.f32 %v1833, %v1933
    %v1935 = vpop.f32.mrb[0].mxu0
    %v1936 = vpop.f32.mrb[0].mxu0
    %v1937 = vadd.f32 %v1833, %v1936
    %v1938 = vpop.f32.mrb[0].mxu0
    %1939 = vmatprep.mubr.bf16.mxu0 0
    %1940 = vmatmul.mubr.bf16.gmra.mrb[0].mxu0 %v1783
    %v1941 = vpop.f32.mrb[0].mxu0
    %v1942 = vadd.f32 %v1833, %v1941
    %v1943 = vpop.f32.mrb[0].mxu0
    %v1944 = vpop.f32.mrb[0].mxu0
    %v1945 = vadd.f32 %v1833, %v1944
    %v1946 = vpop.f32.mrb[0].mxu0
    %1947 = vmatprep.mubr.bf16.mxu0 0
    %1948 = vmatmul.mubr.bf16.gmra.mrb[0].mxu0 %v1784
    %v1949 = vpop.f32.mrb[0].mxu0
    %v1950 = vadd.f32 %v1833, %v1949
    %v1951 = vpop.f32.mrb[0].mxu0
    %v1952 = vpop.f32.mrb[0].mxu0
    %v1953 = vadd.f32 %v1833, %v1952
    %v1954 = vpop.f32.mrb[0].mxu0
    %1955 = vmatprep.mubr.bf16.mxu0 0
    %1956 = vmatmul.mubr.bf16.gmra.mrb[0].mxu0 %v1785
    %v1957 = vpop.f32.mrb[0].mxu0
    %v1958 = vadd.f32 %v1833, %v1957
    %v1959 = vpop.f32.mrb[0].mxu0
    %v1960 = vpop.f32.mrb[0].mxu0
    %v1961 = vadd.f32 %v1833, %v1960
    %v1962 = vpop.f32.mrb[0].mxu0
    %1963 = vmatprep.mubr.bf16.mxu0 0
    %1964 = vmatmul.mubr.bf16.gmra.mrb[0].mxu0 %v1786
    %v1965 = vpop.f32.mrb[0].mxu0
    %v1966 = vadd.f32 %v1833, %v1965
    %v1967 = vpop.f32.mrb[0].mxu0
    %v1968 = vpop.f32.mrb[0].mxu0
    %v1969 = vadd.f32 %v1833, %v1968
    %v1970 = vpop.f32.mrb[0].mxu0
    %1971 = vmatprep.mubr.bf16.mxu0 0
    %1972 = vmatmul.mubr.bf16.gmra.mrb[0].mxu0 %v1787
    %v1973 = vpop.f32.mrb[0].mxu0
    %v1974 = vadd.f32 %v1833, %v1973
    %v1975 = vpop.f32.mrb[0].mxu0
    %v1976 = vpop.f32.mrb[0].mxu0
    %v1977 = vadd.f32 %v1833, %v1976
    %v1978 = vpop.f32.mrb[0].mxu0
    %1979 = vmatprep.mubr.bf16.mxu0 0
    %1980 = vmatmul.mubr.bf16.gmra.mrb[0].mxu0 %v1788
    %v1981 = vpop.f32.mrb[0].mxu0
    %v1982 = vadd.f32 %v1833, %v1981
    %v1983 = vpop.f32.mrb[0].mxu0
    %v1984 = vpop.f32.mrb[0].mxu0
    %v1985 = vadd.f32 %v1833, %v1984
    %v1986 = vpop.f32.mrb[0].mxu0
    %1987 = vmatprep.mubr.bf16.mxu0 0
    %1988 = vmatmul.mubr.bf16.gmra.mrb[0].mxu0 %v1789
    %v1989 = vpop.f32.mrb[0].mxu0
    %v1990 = vadd.f32 %v1833, %v1989
    %v1991 = vpop.f32.mrb[0].mxu0
    %v1992 = vpop.f32.mrb[0].mxu0
    %v1993 = vadd.f32 %v1833, %v1992
    %v1994 = vpop.f32.mrb[0].mxu0
    %1995 = vmatprep.mubr.bf16.mxu0 0
    %1996 = vmatmul.mubr.bf16.gmra.mrb[0].mxu0 %v1790
    %v1997 = vpop.f32.mrb[0].mxu0
    %v1998 = vadd.f32 %v1833, %v1997
    %v1999 = vpop.f32.mrb[0].mxu0
    %v2000 = vpop.f32.mrb[0].mxu0
    %v2001 = vadd.f32 %v1833, %v2000
    %v2002 = vpop.f32.mrb[0].mxu0
    %2003 = vmatprep.mubr.bf16.mxu0 0
    %2004 = vmatmul.mubr.bf16.gmra.mrb[0].mxu0 %v1791
    %v2005 = vpop.f32.mrb[0].mxu0
    %v2006 = vadd.f32 %v1833, %v2005
    %v2007 = vpop.f32.mrb[0].mxu0
    %v2008 = vpop.f32.mrb[0].mxu0
    %v2009 = vadd.f32 %v1833, %v2008
    %v2010 = vpop.f32.mrb[0].mxu0
    %2011 = vmatprep.mubr.bf16.mxu0 0
    %2012 = vmatmul.mubr.bf16.gmra.mrb[0].mxu0 %v1792
    %v2013 = vpop.f32.mrb[0].mxu0
    %v2014 = vadd.f32 %v1833, %v2013
    %v2015 = vpop.f32.mrb[0].mxu0
    %v2016 = vpop.f32.mrb[0].mxu0
    %v2017 = vadd.f32 %v1833, %v2016
    %v2018 = vpop.f32.mrb[0].mxu0
    %2019 = vmatprep.mubr.bf16.mxu0 0
    %2020 = vmatmul.mubr.bf16.gmra.mrb[0].mxu0 %v1793
    %v2021 = vpop.f32.mrb[0].mxu0
    %v2022 = vadd.f32 %v1833, %v2021
    %v2023 = vpop.f32.mrb[0].mxu0
    %v2024 = vpop.f32.mrb[0].mxu0
    %v2025 = vadd.f32 %v1833, %v2024
    %v2026 = vpop.f32.mrb[0].mxu0
    %2027 = vmatprep.mubr.bf16.mxu0 0
    %2028 = vmatmul.mubr.bf16.gmra.mrb[0].mxu0 %v1794
    %v2029 = vpop.f32.mrb[0].mxu0
    %v2030 = vadd.f32 %v1833, %v2029
    %v2031 = vpop.f32.mrb[0].mxu0
    %v2032 = vpop.f32.mrb[0].mxu0
    %v2033 = vadd.f32 %v1833, %v2032
    %v2034 = vpop.f32.mrb[0].mxu0
    %2035 = vmatprep.mubr.bf16.mxu0 0
    %2036 = vmatmul.mubr.bf16.gmra.mrb[0].mxu0 %v1795
    %v2037 = vpop.f32.mrb[0].mxu0
    %v2038 = vadd.f32 %v1833, %v2037
    %v2039 = vpop.f32.mrb[0].mxu0
    %v2040 = vpop.f32.mrb[0].mxu0
    %v2041 = vadd.f32 %v1833, %v2040
    %v2042 = vpop.f32.mrb[0].mxu0
    %2043 = vmatprep.mubr.bf16.mxu0 0
    %2044 = vmatmul.mubr.bf16.gmra.mrb[0].mxu0 %v1796
    %v2045 = vpop.f32.mrb[0].mxu0
    %v2046 = vadd.f32 %v1833, %v2045
    %v2047 = vpop.f32.mrb[0].mxu0
    %v2048 = vpop.f32.mrb[0].mxu0
    %v2049 = vadd.f32 %v1833, %v2048
    %v2050 = vpop.f32.mrb[0].mxu0
    %2051 = vmatprep.mubr.bf16.mxu0 0
    %2052 = vmatmul.mubr.bf16.gmra.mrb[0].mxu0 %v1797
    %v2053 = vpop.f32.mrb[0].mxu0
    %v2054 = vadd.f32 %v1833, %v2053
    %v2055 = vpop.f32.mrb[0].mxu0
    %v2056 = vpop.f32.mrb[0].mxu0
    %v2057 = vadd.f32 %v1833, %v2056
    %v2058 = vpop.f32.mrb[0].mxu0
    %2059 = vmatprep.mubr.bf16.mxu0 0
    %2060 = vmatmul.mubr.bf16.gmra.mrb[0].mxu0 %v1798
    %v2061 = vpop.f32.mrb[0].mxu0
    %v2062 = vadd.f32 %v1833, %v2061
    %v2063 = vpop.f32.mrb[0].mxu0
    %v2064 = vpop.f32.mrb[0].mxu0
    %v2065 = vadd.f32 %v1833, %v2064
    %v2066 = vpop.f32.mrb[0].mxu0
    %2067 = vmatprep.mubr.bf16.mxu0 0
    %2068 = vmatmul.mubr.bf16.gmra.mrb[0].mxu0 %v1799
    %v2069 = vpop.f32.mrb[0].mxu0
    %v2070 = vadd.f32 %v1833, %v2069
    %v2071 = vpop.f32.mrb[0].mxu0
    %v2072 = vpop.f32.mrb[0].mxu0
    %v2073 = vadd.f32 %v1833, %v2072
    %v2074 = vpop.f32.mrb[0].mxu0
    %2075 = vmatprep.mubr.bf16.mxu0 0
    %2076 = vmatmul.mubr.bf16.gmra.mrb[0].mxu0 %v1800
    %v2077 = vpop.f32.mrb[0].mxu0
    %v2078 = vadd.f32 %v1833, %v2077
    %v2079 = vpop.f32.mrb[0].mxu0
    %v2080 = vpop.f32.mrb[0].mxu0
    %v2081 = vadd.f32 %v1833, %v2080
    %v2082 = vpop.f32.mrb[0].mxu0
    %2083 = vmatprep.mubr.bf16.mxu0 0
    %2084 = vmatmul.mubr.bf16.gmra.mrb[0].mxu0 %v1801
    %v2085 = vpop.f32.mrb[0].mxu0
    %v2086 = vadd.f32 %v1833, %v2085
    %v2087 = vpop.f32.mrb[0].mxu0
    %v2088 = vpop.f32.mrb[0].mxu0
    %v2089 = vadd.f32 %v1833, %v2088
    %v2090 = vpop.f32.mrb[0].mxu0
    %2091 = vmatprep.mubr.bf16.mxu0 0
    %2092 = vmatmul.mubr.bf16.gmra.mrb[0].mxu0 %v1802
    %v2093 = vpop.f32.mrb[0].mxu0
    %v2094 = vadd.f32 %v1833, %v2093
    %v2095 = vpop.f32.mrb[0].mxu0
    %v2096 = vpop.f32.mrb[0].mxu0
    %v2097 = vadd.f32 %v1833, %v2096
    %v2098 = vpop.f32.mrb[0].mxu0
    %2099 = vmatprep.mubr.bf16.mxu0 0
    %2100 = vmatmul.mubr.bf16.gmra.mrb[0].mxu0 %v1803
    %v2101 = vpop.f32.mrb[0].mxu0
    %v2102 = vadd.f32 %v1833, %v2101
    %v2103 = vpop.f32.mrb[0].mxu0
    %v2104 = vpop.f32.mrb[0].mxu0
    %v2105 = vadd.f32 %v1833, %v2104
    %v2106 = vpop.f32.mrb[0].mxu0
    %2107 = vmatprep.mubr.bf16.mxu0 0
    %2108 = vmatmul.mubr.bf16.gmra.mrb[0].mxu0 %v1804
    %v2109 = vpop.f32.mrb[0].mxu0
    %v2110 = vadd.f32 %v1833, %v2109
    %v2111 = vpop.f32.mrb[0].mxu0
    %v2112 = vpop.f32.mrb[0].mxu0
    %v2113 = vadd.f32 %v1833, %v2112
    %v2114 = vpop.f32.mrb[0].mxu0
    %2115 = vmatprep.mubr.bf16.mxu0 0
    %2116 = vmatmul.mubr.bf16.gmra.mrb[0].mxu0 %v1805
    %v2117 = vpop.f32.mrb[0].mxu0
    %v2118 = vadd.f32 %v1833, %v2117
    %v2119 = vpop.f32.mrb[0].mxu0
    %v2120 = vpop.f32.mrb[0].mxu0
    %v2121 = vadd.f32 %v1833, %v2120
    %v2122 = vpop.f32.mrb[0].mxu0
    %2123 = vmatprep.mubr.bf16.mxu0 0
    %2124 = vmatmul.mubr.bf16.gmra.mrb[0].mxu0 %v1806
    %v2125 = vpop.f32.mrb[0].mxu0
    %v2126 = vadd.f32 %v1833, %v2125
    %v2127 = vpop.f32.mrb[0].mxu0
    %v2128 = vpop.f32.mrb[0].mxu0
    %v2129 = vadd.f32 %v1833, %v2128
    %v2130 = vpop.f32.mrb[0].mxu0
    %2131 = vmatprep.mubr.bf16.mxu0 0
    %2132 = vmatmul.mubr.bf16.gmra.mrb[0].mxu0 %v1807
    %v2133 = vpop.f32.mrb[0].mxu0
    %v2134 = vadd.f32 %v1833, %v2133
    %v2135 = vpop.f32.mrb[0].mxu0
    %v2136 = vpop.f32.mrb[0].mxu0
    %v2137 = vadd.f32 %v1833, %v2136
    %v2138 = vpop.f32.mrb[0].mxu0
    %2139 = vmatprep.mubr.bf16.mxu0 0
    %2140 = vmatmul.mubr.bf16.gmra.mrb[0].mxu0 %v1808
    %v2141 = vpop.f32.mrb[0].mxu0
    %v2142 = vadd.f32 %v1833, %v2141
    %v2143 = vpop.f32.mrb[0].mxu0
    %v2144 = vpop.f32.mrb[0].mxu0
    %v2145 = vadd.f32 %v1833, %v2144
    %v2146 = vpop.f32.mrb[0].mxu0
    %2147 = vmatprep.mubr.bf16.mxu0 0
    %2148 = vmatmul.mubr.bf16.gmra.mrb[0].mxu0 %v1809
    %v2149 = vpop.f32.mrb[0].mxu0
    %v2150 = vadd.f32 %v1833, %v2149
    %v2151 = vpop.f32.mrb[0].mxu0
    %v2152 = vpop.f32.mrb[0].mxu0
    %v2153 = vadd.f32 %v1833, %v2152
    %v2154 = vpop.f32.mrb[0].mxu0
    %2155 = vmatprep.mubr.bf16.mxu0 0
    %2156 = vmatmul.mubr.bf16.gmra.mrb[0].mxu0 %v1810
    %v2157 = vpop.f32.mrb[0].mxu0
    %v2158 = vadd.f32 %v1833, %v2157
    %v2159 = vpop.f32.mrb[0].mxu0
    %v2160 = vpop.f32.mrb[0].mxu0
    %v2161 = vadd.f32 %v1833, %v2160
    %v2162 = vpop.f32.mrb[0].mxu0
    %2163 = vmatprep.mubr.bf16.mxu0 0
    %2164 = vmatmul.mubr.bf16.gmra.mrb[0].mxu0 %v1811
    %v2165 = vpop.f32.mrb[0].mxu0
    %v2166 = vadd.f32 %v1833, %v2165
    %v2167 = vpop.f32.mrb[0].mxu0
    %v2168 = vpop.f32.mrb[0].mxu0
    %v2169 = vadd.f32 %v1833, %v2168
    %v2170 = vpop.f32.mrb[0].mxu0
    %2171 = vdwg.mxu0
    %v2172 = vmax.f32 %v1918, 0.0
    %v2173 = vmax.f32 %v1921, 0.0
    %v2174 = vmax.f32 %v1926, 0.0
    %v2175 = vmax.f32 %v1929, 0.0
    %v2176 = vmax.f32 %v1934, 0.0
    %v2177 = vmax.f32 %v1937, 0.0
    %v2178 = vmax.f32 %v1942, 0.0
    %v2179 = vmax.f32 %v1945, 0.0
    %v2180 = vmax.f32 %v1950, 0.0
    %v2181 = vmax.f32 %v1953, 0.0
    %v2182 = vmax.f32 %v1958, 0.0
    %v2183 = vmax.f32 %v1961, 0.0
    %v2184 = vmax.f32 %v1966, 0.0
    %v2185 = vmax.f32 %v1969, 0.0
    %v2186 = vmax.f32 %v1974, 0.0
    %v2187 = vmax.f32 %v1977, 0.0
    %v2188 = vmax.f32 %v1982, 0.0
    %v2189 = vmax.f32 %v1985, 0.0
    %v2190 = vmax.f32 %v1990, 0.0
    %v2191 = vmax.f32 %v1993, 0.0
    %v2192 = vmax.f32 %v1998, 0.0
    %v2193 = vmax.f32 %v2001, 0.0
    %v2194 = vmax.f32 %v2006, 0.0
    %v2195 = vmax.f32 %v2009, 0.0
    %v2196 = vmax.f32 %v2014, 0.0
    %v2197 = vmax.f32 %v2017, 0.0
    %v2198 = vmax.f32 %v2022, 0.0
    %v2199 = vmax.f32 %v2025, 0.0
    %v2200 = vmax.f32 %v2030, 0.0
    %v2201 = vmax.f32 %v2033, 0.0
    %v2202 = vmax.f32 %v2038, 0.0
    %v2203 = vmax.f32 %v2041, 0.0
    %v2204 = vmax.f32 %v2046, 0.0
    %v2205 = vmax.f32 %v2049, 0.0
    %v2206 = vmax.f32 %v2054, 0.0
    %v2207 = vmax.f32 %v2057, 0.0
    %v2208 = vmax.f32 %v2062, 0.0
    %v2209 = vmax.f32 %v2065, 0.0
    %v2210 = vmax.f32 %v2070, 0.0
    %v2211 = vmax.f32 %v2073, 0.0
    %v2212 = vmax.f32 %v2078, 0.0
    %v2213 = vmax.f32 %v2081, 0.0
    %v2214 = vmax.f32 %v2086, 0.0
    %v2215 = vmax.f32 %v2089, 0.0
    %v2216 = vmax.f32 %v2094, 0.0
    %v2217 = vmax.f32 %v2097, 0.0
    %v2218 = vmax.f32 %v2102, 0.0
    %v2219 = vmax.f32 %v2105, 0.0
    %v2220 = vmax.f32 %v2110, 0.0
    %v2221 = vmax.f32 %v2113, 0.0
    %v2222 = vmax.f32 %v2118, 0.0
    %v2223 = vmax.f32 %v2121, 0.0
    %v2224 = vmax.f32 %v2126, 0.0
    %v2225 = vmax.f32 %v2129, 0.0
    %v2226 = vmax.f32 %v2134, 0.0
    %v2227 = vmax.f32 %v2137, 0.0
    %v2228 = vmax.f32 %v2142, 0.0
    %v2229 = vmax.f32 %v2145, 0.0
    %v2230 = vmax.f32 %v2150, 0.0
    %v2231 = vmax.f32 %v2153, 0.0
    %v2232 = vmax.f32 %v2158, 0.0
    %v2233 = vmax.f32 %v2161, 0.0
    %v2234 = vmax.f32 %v2166, 0.0
    %v2235 = vmax.f32 %v2169, 0.0
    %v2236 = vld [vmem:[%s5] sm:$0x1]
    %v2237 = vpack.c.bf16 %v2173, %v2172
    %v2238 = vpack.c.bf16 %v2175, %v2174
    %v2239 = vpack.c.bf16 %v2177, %v2176
    %v2240 = vpack.c.bf16 %v2179, %v2178
    %v2241 = vpack.c.bf16 %v2181, %v2180
    %v2242 = vpack.c.bf16 %v2183, %v2182
    %v2243 = vpack.c.bf16 %v2185, %v2184
    %v2244 = vpack.c.bf16 %v2187, %v2186
    %v2245 = vpack.c.bf16 %v2189, %v2188
    %v2246 = vpack.c.bf16 %v2191, %v2190
    %v2247 = vpack.c.bf16 %v2193, %v2192
    %v2248 = vpack.c.bf16 %v2195, %v2194
    %v2249 = vpack.c.bf16 %v2197, %v2196
    %v2250 = vpack.c.bf16 %v2199, %v2198
    %v2251 = vpack.c.bf16 %v2201, %v2200
    %v2252 = vpack.c.bf16 %v2203, %v2202
    %v2253 = vpack.c.bf16 %v2205, %v2204
    %v2254 = vpack.c.bf16 %v2207, %v2206
    %v2255 = vpack.c.bf16 %v2209, %v2208
    %v2256 = vpack.c.bf16 %v2211, %v2210
    %v2257 = vpack.c.bf16 %v2213, %v2212
    %v2258 = vpack.c.bf16 %v2215, %v2214
    %v2259 = vpack.c.bf16 %v2217, %v2216
    %v2260 = vpack.c.bf16 %v2219, %v2218
    %v2261 = vpack.c.bf16 %v2221, %v2220
    %v2262 = vpack.c.bf16 %v2223, %v2222
    %v2263 = vpack.c.bf16 %v2225, %v2224
    %v2264 = vpack.c.bf16 %v2227, %v2226
    %v2265 = vpack.c.bf16 %v2229, %v2228
    %v2266 = vpack.c.bf16 %v2231, %v2230
    %v2267 = vpack.c.bf16 %v2233, %v2232
    %v2268 = vpack.c.bf16 %v2235, %v2234
    %v2269 = vld [vmem:[%s6] sm:$0x3]
    %2271 = vset.pattern.permute.xlu0 0
    %2272 = vperm.xlu0 %2271, %v2269
    %v2273 = vpop.permute.xlu0 %2272
    %2275 = vmatprep.subr.bf16.mxu0 0
    %2276 = vmatpush1.bf16.xpose.msra.mxu0 %v2237
    %2277 = vmatprep.subr.bf16.mxu0 0
    %2278 = vmatpush1.bf16.xpose.msra.mxu0 %v2238
    %2279 = vmatprep.subr.bf16.mxu0 0
    %2280 = vmatpush1.bf16.xpose.msra.mxu0 %v2239
    %2281 = vmatprep.subr.bf16.mxu0 0
    %2282 = vmatpush1.bf16.xpose.msra.mxu0 %v2240
    %2283 = vmatprep.subr.bf16.mxu0 0
    %2284 = vmatpush1.bf16.xpose.msra.mxu0 %v2241
    %2285 = vmatprep.subr.bf16.mxu0 0
    %2286 = vmatpush1.bf16.xpose.msra.mxu0 %v2242
    %2287 = vmatprep.subr.bf16.mxu0 0
    %2288 = vmatpush1.bf16.xpose.msra.mxu0 %v2243
    %2289 = vmatprep.subr.bf16.mxu0 0
    %2290 = vmatpush1.bf16.xpose.msra.mxu0 %v2244
    %2291 = vmatprep.subr.bf16.mxu0 0
    %2292 = vmatpush1.bf16.xpose.msra.mxu0 %v2245
    %2293 = vmatprep.subr.bf16.mxu0 0
    %2294 = vmatpush1.bf16.xpose.msra.mxu0 %v2246
    %2295 = vmatprep.subr.bf16.mxu0 0
    %2296 = vmatpush1.bf16.xpose.msra.mxu0 %v2247
    %2297 = vmatprep.subr.bf16.mxu0 0
    %2298 = vmatpush1.bf16.xpose.msra.mxu0 %v2248
    %2299 = vmatprep.subr.bf16.mxu0 0
    %2300 = vmatpush1.bf16.xpose.msra.mxu0 %v2249
    %2301 = vmatprep.subr.bf16.mxu0 0
    %2302 = vmatpush1.bf16.xpose.msra.mxu0 %v2250
    %2303 = vmatprep.subr.bf16.mxu0 0
    %2304 = vmatpush1.bf16.xpose.msra.mxu0 %v2251
    %2305 = vmatprep.subr.bf16.mxu0 0
    %2306 = vmatpush1.bf16.xpose.msra.mxu0 %v2252
    %2307 = vmatprep.mubr.bf16.mxu0 0
    %2308 = vmatmul.mubr.bf16.gmra.mrb[0].mxu0 %v2236
    %v2309 = vpop.f32.mrb[0].mxu0
    %v2310 = vadd.f32 %v2273, %v2309
    %v2311 = vpop.f32.mrb[0].mxu0
    %v2312 = vadd.f32 %v2273, %v2311
    %v2313 = vpop.f32.mrb[0].mxu0
    %v2314 = vpop.f32.mrb[0].mxu0
    %2315 = vdwg.mxu0
    %2316 = vmatprep.subr.bf16.mxu0 0
    %2317 = vmatpush1.bf16.xpose.msra.mxu0 %v2253
    %2318 = vmatprep.subr.bf16.mxu0 0
    %2319 = vmatpush1.bf16.xpose.msra.mxu0 %v2254
    %2320 = vmatprep.subr.bf16.mxu0 0
    %2321 = vmatpush1.bf16.xpose.msra.mxu0 %v2255
    %2322 = vmatprep.subr.bf16.mxu0 0
    %2323 = vmatpush1.bf16.xpose.msra.mxu0 %v2256
    %2324 = vmatprep.subr.bf16.mxu0 0
    %2325 = vmatpush1.bf16.xpose.msra.mxu0 %v2257
    %2326 = vmatprep.subr.bf16.mxu0 0
    %2327 = vmatpush1.bf16.xpose.msra.mxu0 %v2258
    %2328 = vmatprep.subr.bf16.mxu0 0
    %2329 = vmatpush1.bf16.xpose.msra.mxu0 %v2259
    %2330 = vmatprep.subr.bf16.mxu0 0
    %2331 = vmatpush1.bf16.xpose.msra.mxu0 %v2260
    %2332 = vmatprep.subr.bf16.mxu0 0
    %2333 = vmatpush1.bf16.xpose.msra.mxu0 %v2261
    %2334 = vmatprep.subr.bf16.mxu0 0
    %2335 = vmatpush1.bf16.xpose.msra.mxu0 %v2262
    %2336 = vmatprep.subr.bf16.mxu0 0
    %2337 = vmatpush1.bf16.xpose.msra.mxu0 %v2263
    %2338 = vmatprep.subr.bf16.mxu0 0
    %2339 = vmatpush1.bf16.xpose.msra.mxu0 %v2264
    %2340 = vmatprep.subr.bf16.mxu0 0
    %2341 = vmatpush1.bf16.xpose.msra.mxu0 %v2265
    %2342 = vmatprep.subr.bf16.mxu0 0
    %2343 = vmatpush1.bf16.xpose.msra.mxu0 %v2266
    %2344 = vmatprep.subr.bf16.mxu0 0
    %2345 = vmatpush1.bf16.xpose.msra.mxu0 %v2267
    %2346 = vmatprep.subr.bf16.mxu0 0
    %2347 = vmatpush1.bf16.xpose.msra.mxu0 %v2268
    %2348 = vmatprep.mubr.bf16.mxu0 0
    %2349 = vmatmul.mubr.bf16.gmra.mrb[0].mxu0 %v2236
    %v2350 = vpop.f32.mrb[0].mxu0
    %v2351 = vadd.f32 %v2273, %v2350
    %v2352 = vpop.f32.mrb[0].mxu0
    %v2353 = vadd.f32 %v2273, %v2352
    %v2354 = vpop.f32.mrb[0].mxu0
    %v2355 = vpop.f32.mrb[0].mxu0
    %2356 = vdwg.mxu0
    %v2361 = vcombine.low %v2310, %v2312
    %v2362 = vcombine.low %v2351, %v2353
    %v2364 = vunpack.c.l.s4 1983009808
    %v2365 = vunpack.c.0.s8 %v2364
    %v2366 = vlaneseq
    %v2367 = vshrl.u32 %v2366, 7
    %v2368 = vsub.s32 %v2365, %v2367
    %v2369 = vrot.slane %v2361, %v2368
    %v2371 = vunpack.c.l.s4 1983009808
    %v2372 = vunpack.c.0.s8 %v2371
    %v2373 = vlaneseq
    %v2374 = vshrl.u32 %v2373, 7
    %v2375 = vsub.s32 %v2372, %v2374
    %v2376 = vrot.slane %v2362, %v2375
    %v2377 = vcombine.low %v2369, %v2376
    %2379 = vst [vmem:[#allocation2] sm:$0xff] %v2377
    // Predicated region
    $region30: #{tpu_custom_call.1} parent=1 // pred_check
      _
    $region31: #{tpu_custom_call.1} parent=1 // pred_check_branch
      %2381 = sbr.rel (0) target = $region33
    $region32: #{tpu_custom_call.1} parent=1 // pred_region
      %s2383 = ssub.s32 128, 128
      %2384 = vsyncadd [#allocation3], %s2383
      %s2386 = sshll.u32 [#allocation2], 4
      %s2387 = int_to_ptr.vmem [resolvable:$true] %s2386
      %2389 = dma.vmem_to_hbm [thread:$0]  %s2387, 128, %s7, [#allocation3]
    $region33: #{tpu_custom_call.1} parent=1 // pred_fallthru
      _
    // Predicated region
    $region34: #{tpu_custom_call.1} parent=1 // pred_check
      _
    $region35: #{tpu_custom_call.1} parent=1 // pred_check_branch
      %2391 = sbr.rel (0) target = $region37
    $region36: #{tpu_custom_call.1} parent=1 // pred_region
      %2392 = dma.done [#allocation3], 128
    $region37: #{tpu_custom_call.1} parent=1 // pred_fallthru
      _
    %2393 = vsyncpa [#allocation3], 1

</llo_original>
